<compile_context>
chip_gen: v5e
topology: v5e:2x2
jax: 0.10.0
libtpu: 0.0.40
codegen_flags: <defaults>
</compile_context>

<pallas_src>
import jax
import jax.numpy as jnp
from jax.experimental import pallas as pl
from jax.experimental.pallas import tpu as pltpu

_FEAT = 4        # cartpole observation width
_HIDDEN = 128    # fc1 output width
_OUT = 2         # fc2 output width (real logits)
_OUT_PAD = 128   # lane-dense width used only for the in-kernel MXU matmul


def _policy_kernel(x_ref, w1_ref, b1_ref, w2_ref, b2_ref, o_ref):
    # x_ref : (block_rows, 4)   f32 observations
    # w1_ref: (4, 128) f32      b1_ref: (1, 128) f32
    # w2_ref: (128, 128) bf16   (2 real cols | zero pad), VMEM-resident
    # b2_ref: (1, 2) f32
    # o_ref : (block_rows, 2) f32
    x = x_ref[...]
    w1 = w1_ref[...]

    # fc1 + bias on the VPU: K=4 is far too small for the MXU, so do a
    # broadcast-mul accumulate over the 4 feature rows plus the bias row.
    h = b1_ref[...] + x[:, 0:1] * w1[0:1, :]
    for f in range(1, _FEAT):
        h = h + x[:, f:f + 1] * w1[f:f + 1, :]
    h = jnp.maximum(h, 0.0)  # ReLU in f32 on the VPU (v5e-safe)

    # fc2 on the MXU: bf16 inputs (f32 MXU is multi-pass bf16 emulation on all
    # three generations), f32 accumulation, lane-dense 128-wide matmul.
    out = jnp.dot(h.astype(jnp.bfloat16), w2_ref[...],
                  preferred_element_type=jnp.float32)        # (bm, 128) f32

    # Store only the 2 real logit columns (+ b2); writeback is 8 B/row.
    o_ref[...] = (out[:, :_OUT] + b2_ref[...]).astype(o_ref.dtype)


def cartpole_reinforce_forward(x, w1, b1, w2, b2, *, block_rows=512):
    """Policy forward pass: fc2(relu(fc1(x))).

    x : [B, 4] f32 observations
    w1: [4, 128], b1: [1, 128], w2: [128, 2], b2: [1, 2]  (stored [in, out])
    returns [B, 2] f32 logits.
    """
    B = x.shape[0]

    # Clamp the block size for tiny batches (keep it sublane-aligned).
    bm = min(block_rows, max(8, ((B + 7) // 8) * 8))
    n_blocks = pl.cdiv(B, bm)
    b_pad = n_blocks * bm
    x_p = jnp.pad(x, ((0, b_pad - B), (0, 0))) if b_pad != B else x

    # Pad w2 to 128 output lanes (lane-dense MXU matmul) and pre-cast to bf16
    # so the cast is not repeated per grid step; it is DMA'd once (constant
    # index_map) and stays VMEM-resident.
    w2_pad = jnp.pad(w2, ((0, 0), (0, _OUT_PAD - w2.shape[1]))).astype(jnp.bfloat16)

    out = pl.pallas_call(
        _policy_kernel,
        out_shape=jax.ShapeDtypeStruct((b_pad, _OUT), jnp.float32),
        grid_spec=pltpu.PrefetchScalarGridSpec(
            num_scalar_prefetch=0,
            grid=(n_blocks,),
            in_specs=[
                pl.BlockSpec((bm, _FEAT), lambda i: (i, 0)),        # x tile
                pl.BlockSpec((_FEAT, _HIDDEN), lambda i: (0, 0)),   # w1 (resident)
                pl.BlockSpec((1, _HIDDEN), lambda i: (0, 0)),       # b1 (resident)
                pl.BlockSpec((_HIDDEN, _OUT_PAD), lambda i: (0, 0)),# w2 (resident)
                pl.BlockSpec((1, _OUT), lambda i: (0, 0)),          # b2 (resident)
            ],
            out_specs=pl.BlockSpec((bm, _OUT), lambda i: (i, 0)),
        ),
        compiler_params=pltpu.CompilerParams(
            # On v7x, use pltpu.CORE_PARALLEL here to split the batch axis
            # across both TensorCores; "parallel" is portable to v5e/v6e.
            dimension_semantics=("parallel",),
        ),
    )(x_p, w1, b1, w2_pad, b2)

    return out[:B]


def init_params(key):
    """Deterministic init mirroring nn.Linear's default U(-1/sqrt(fan_in), +)."""
    k1, k2, k3, k4 = jax.random.split(key, 4)
    bound1 = 1.0 / jnp.sqrt(4.0)
    bound2 = 1.0 / jnp.sqrt(128.0)
    # Stored as [in, out] (transpose of PyTorch's [out, in]).
    w1 = jax.random.uniform(k1, (4, 128), jnp.float32, -bound1, bound1)
    b1 = jax.random.uniform(k2, (1, 128), jnp.float32, -bound1, bound1)
    w2 = jax.random.uniform(k3, (128, 2), jnp.float32, -bound2, bound2)
    b2 = jax.random.uniform(k4, (1, 2), jnp.float32, -bound2, bound2)
    return w1, b1, w2, b2


def reference_forward(x, w1, b1, w2, b2):
    h = jnp.maximum(x @ w1 + b1, 0.0)
    return h @ w2 + b2


if __name__ == "__main__":
    key = jax.random.PRNGKey(0)
    k_x, k_p = jax.random.split(key)

    # Small batch of cartpole observations (4 features each).  1000 rows gives
    # two 512-row grid steps (pipeline / parallel axis engage) and exercises
    # the batch-padding path.  For real benchmarking use B >= ~16K.
    B = 1000
    x = jax.random.normal(k_x, (B, 4), jnp.float32)
    w1, b1, w2, b2 = init_params(k_p)

    fwd = jax.jit(cartpole_reinforce_forward)
    out = jax.block_until_ready(fwd(x, w1, b1, w2, b2))

    ref = reference_forward(x, w1, b1, w2, b2)
    assert out.shape == (B, 2)
    # Tolerance loosened vs. the pure-f32 version because fc2 runs on the MXU
    # with bf16 inputs (f32 accumulate).
    assert jnp.allclose(out, ref, atol=2e-2, rtol=2e-2), float(
        jnp.max(jnp.abs(out - ref)))

    print("KERNEL_OK")
</pallas_src>

<mosaic_0001>
module attributes {stable_mosaic.version = 11 : i64} {
  func.func @_policy_kernel(%arg0: i32, %arg1: memref<512x4xf32, #tpu.memory_space<vmem>>, %arg2: memref<4x128xf32, #tpu.memory_space<vmem>>, %arg3: memref<1x128xf32, #tpu.memory_space<vmem>>, %arg4: memref<128x128xbf16, #tpu.memory_space<vmem>>, %arg5: memref<1x2xf32, #tpu.memory_space<vmem>>, %arg6: memref<512x2xf32, #tpu.memory_space<vmem>>) attributes {dimension_semantics = [#tpu.dimension_semantics<parallel>], iteration_bounds = array<i64: 2>, scalar_prefetch = 0 : i64, scratch_operands = 0 : i64, tpu.core_type = #tpu.core_type<tc>, window_params = [{transform_indices = @transform_0, window_bounds = array<i64: 512, 4>}, {pipeline_mode = #tpu.pipeline_mode<synchronous>, transform_indices = @transform_1, window_bounds = array<i64: 4, 128>}, {pipeline_mode = #tpu.pipeline_mode<synchronous>, transform_indices = @transform_2, window_bounds = array<i64: 1, 128>}, {pipeline_mode = #tpu.pipeline_mode<synchronous>, transform_indices = @transform_3, window_bounds = array<i64: 128, 128>}, {pipeline_mode = #tpu.pipeline_mode<synchronous>, transform_indices = @transform_4, window_bounds = array<i64: 1, 2>}, {transform_indices = @transform_5, window_bounds = array<i64: 512, 2>}]} {
    %c0 = arith.constant 0 : index
    %c0_0 = arith.constant 0 : index
    %0 = vector.load %arg1[%c0, %c0_0] : memref<512x4xf32, #tpu.memory_space<vmem>>, vector<512x4xf32>
    %c0_1 = arith.constant 0 : index
    %c0_2 = arith.constant 0 : index
    %1 = vector.load %arg2[%c0_1, %c0_2] : memref<4x128xf32, #tpu.memory_space<vmem>>, vector<4x128xf32>
    %c0_3 = arith.constant 0 : index
    %c0_4 = arith.constant 0 : index
    %2 = vector.load %arg3[%c0_3, %c0_4] : memref<1x128xf32, #tpu.memory_space<vmem>>, vector<1x128xf32>
    %3 = vector.extract_strided_slice %0 {offsets = [0, 0], sizes = [512, 1], strides = [1, 1]} : vector<512x4xf32> to vector<512x1xf32>
    %4 = vector.extract_strided_slice %1 {offsets = [0, 0], sizes = [1, 128], strides = [1, 1]} : vector<4x128xf32> to vector<1x128xf32>
    %5 = vector.broadcast %3 : vector<512x1xf32> to vector<512x128xf32>
    %6 = vector.broadcast %4 : vector<1x128xf32> to vector<512x128xf32>
    %7 = arith.mulf %5, %6 : vector<512x128xf32>
    %8 = vector.broadcast %2 : vector<1x128xf32> to vector<512x128xf32>
    %9 = arith.addf %8, %7 : vector<512x128xf32>
    %10 = vector.extract_strided_slice %0 {offsets = [0, 1], sizes = [512, 1], strides = [1, 1]} : vector<512x4xf32> to vector<512x1xf32>
    %11 = vector.extract_strided_slice %1 {offsets = [1, 0], sizes = [1, 128], strides = [1, 1]} : vector<4x128xf32> to vector<1x128xf32>
    %12 = vector.broadcast %10 : vector<512x1xf32> to vector<512x128xf32>
    %13 = vector.broadcast %11 : vector<1x128xf32> to vector<512x128xf32>
    %14 = arith.mulf %12, %13 : vector<512x128xf32>
    %15 = arith.addf %9, %14 : vector<512x128xf32>
    %16 = vector.extract_strided_slice %0 {offsets = [0, 2], sizes = [512, 1], strides = [1, 1]} : vector<512x4xf32> to vector<512x1xf32>
    %17 = vector.extract_strided_slice %1 {offsets = [2, 0], sizes = [1, 128], strides = [1, 1]} : vector<4x128xf32> to vector<1x128xf32>
    %18 = vector.broadcast %16 : vector<512x1xf32> to vector<512x128xf32>
    %19 = vector.broadcast %17 : vector<1x128xf32> to vector<512x128xf32>
    %20 = arith.mulf %18, %19 : vector<512x128xf32>
    %21 = arith.addf %15, %20 : vector<512x128xf32>
    %22 = vector.extract_strided_slice %0 {offsets = [0, 3], sizes = [512, 1], strides = [1, 1]} : vector<512x4xf32> to vector<512x1xf32>
    %23 = vector.extract_strided_slice %1 {offsets = [3, 0], sizes = [1, 128], strides = [1, 1]} : vector<4x128xf32> to vector<1x128xf32>
    %24 = vector.broadcast %22 : vector<512x1xf32> to vector<512x128xf32>
    %25 = vector.broadcast %23 : vector<1x128xf32> to vector<512x128xf32>
    %26 = arith.mulf %24, %25 : vector<512x128xf32>
    %27 = arith.addf %21, %26 : vector<512x128xf32>
    %cst = arith.constant 0.000000e+00 : f32
    %28 = vector.broadcast %cst : f32 to vector<512x128xf32>
    %29 = arith.maximumf %27, %28 : vector<512x128xf32>
    %30 = arith.truncf %29 : vector<512x128xf32> to vector<512x128xbf16>
    %c0_5 = arith.constant 0 : index
    %c0_6 = arith.constant 0 : index
    %31 = vector.load %arg4[%c0_5, %c0_6] : memref<128x128xbf16, #tpu.memory_space<vmem>>, vector<128x128xbf16>
    %cst_7 = arith.constant dense<0.000000e+00> : vector<512x128xf32>
    %32 = tpu.matmul %30, %31, %cst_7 {dimension_numbers = #tpu.dot_dimension_numbers<[1], [0], [0], [1], [0, 0, 1, 1], [], []>} : vector<512x128xbf16>, vector<128x128xbf16>, vector<512x128xf32> -> vector<512x128xf32>
    %33 = vector.extract_strided_slice %32 {offsets = [0, 0], sizes = [512, 2], strides = [1, 1]} : vector<512x128xf32> to vector<512x2xf32>
    %c0_8 = arith.constant 0 : index
    %c0_9 = arith.constant 0 : index
    %34 = vector.load %arg5[%c0_8, %c0_9] : memref<1x2xf32, #tpu.memory_space<vmem>>, vector<1x2xf32>
    %35 = vector.broadcast %34 : vector<1x2xf32> to vector<512x2xf32>
    %36 = arith.addf %33, %35 : vector<512x2xf32>
    %c0_10 = arith.constant 0 : index
    %c0_11 = arith.constant 0 : index
    %37 = vector.load %arg6[%c0_10, %c0_11] : memref<512x2xf32, #tpu.memory_space<vmem>>, vector<512x2xf32>
    tpu.vector_store %arg6[%c0_10, %c0_11], %36 {strides = array<i32>} : memref<512x2xf32, #tpu.memory_space<vmem>>, vector<512x2xf32>,
    return
  }
  func.func @transform_0(%arg0: i32) -> (i32, i32) {
    %c0_i32 = arith.constant 0 : i32
    %c0_i32_0 = arith.constant 0 : i32
    return %arg0, %c0_i32 : i32, i32
  }
  func.func @transform_1(%arg0: i32) -> (i32, i32) {
    %c0_i32 = arith.constant 0 : i32
    %c0_i32_0 = arith.constant 0 : i32
    %c0_i32_1 = arith.constant 0 : i32
    return %c0_i32, %c0_i32_0 : i32, i32
  }
  func.func @transform_2(%arg0: i32) -> (i32, i32) {
    %c0_i32 = arith.constant 0 : i32
    %c0_i32_0 = arith.constant 0 : i32
    %c0_i32_1 = arith.constant 0 : i32
    return %c0_i32, %c0_i32_0 : i32, i32
  }
  func.func @transform_3(%arg0: i32) -> (i32, i32) {
    %c0_i32 = arith.constant 0 : i32
    %c0_i32_0 = arith.constant 0 : i32
    %c0_i32_1 = arith.constant 0 : i32
    return %c0_i32, %c0_i32_0 : i32, i32
  }
  func.func @transform_4(%arg0: i32) -> (i32, i32) {
    %c0_i32 = arith.constant 0 : i32
    %c0_i32_0 = arith.constant 0 : i32
    %c0_i32_1 = arith.constant 0 : i32
    return %c0_i32, %c0_i32_0 : i32, i32
  }
  func.func @transform_5(%arg0: i32) -> (i32, i32) {
    %c0_i32 = arith.constant 0 : i32
    %c0_i32_0 = arith.constant 0 : i32
    return %arg0, %c0_i32 : i32, i32
  }
}

</mosaic_0001>

<llo_original>
// kernel: cartpole_reinforce_forward.1
$region0: #{cartpole_reinforce_forward.1}
  #allocation0 [shape = 'u32[]', space=smem, size = 0x4, offset = 0x4, fixed_abs, tag = 'smem constant byte address 0x4 - core index']
  #allocation1 [shape = 'u32[72,128]{1,0:T(1,128)}', space=vmem, size = 0x9000, scoped, tag = 'internal scratch']
  %s0 = inlined_call_operand.vmem [shape: f32[1024,4], index: 0, kind: input, shape index: {}]
  %s1 = inlined_call_operand.vmem [shape: f32[4,128], index: 1, kind: input, shape index: {}]
  %s2 = inlined_call_operand.vmem [shape: f32[1,128], index: 2, kind: input, shape index: {}]
  %s3 = inlined_call_operand.vmem [shape: bf16[128,128], index: 3, kind: input, shape index: {}]
  %s4 = inlined_call_operand.vmem [shape: f32[1,2], index: 4, kind: input, shape index: {}]
  %s5 = inlined_call_operand.vmem [shape: f32[1024,2], index: 5, kind: output, shape index: {}]
  %s6 = sld [smem:[#allocation0]]
  $region53: #{cartpole_reinforce_forward.1} parent=0
    _
  %s8 = ssub.s32 1, %s6
  %s9 = scalar_select 0, %s8, %s6
  loop: start=0, step=1, limit=4
  $region2: #{cartpole_reinforce_forward.1} parent=0 // loop_pre_header
    _
  $region3: #{cartpole_reinforce_forward.1} parent=0 // loop_header
    %s11 = sphi 0, %s15
    %p12 = scmp.ge.s32.totalorder %s11, 4
    %s21 = sphi 0, %s23
    %s24 = sphi 0, %s21
    %s25 = sphi 0, %s24
    %s41 = sphi 0, %s25
    %s45 = sphi 0, %s45
    %s47 = sphi 0, %s45
    %s48 = sphi 0, %s47
    %s62 = sphi 0, %s48
    %s66 = sphi 0, %s66
    %s68 = sphi 0, %s66
    %s69 = sphi 0, %s68
    %s83 = sphi 0, %s69
    %s87 = sphi 0, %s87
    %s89 = sphi 0, %s87
    %s90 = sphi 0, %s89
    %s104 = sphi 0, %s90
    %s108 = sphi 0, %s108
    %s110 = sphi 0, %s108
    %s111 = sphi 0, %s110
    %s125 = sphi 0, %s111
    %s131 = sphi 0, %s133
    %s134 = sphi 0, %s131
    %s135 = sphi 0, %s134
    %s151 = sphi 0, %s135
  $region4: #{cartpole_reinforce_forward.1} parent=0 // loop_header_branch
    %14 = sbr.rel (%p12) target = $region8
  $region5: #{cartpole_reinforce_forward.1} parent=0 // loop_body
    %s16 = ssub.s32 %s11, 1
    %s17 = ssub.s32 %s11, 2
    %s18 = sadd.s32 %s11, 1
    %s19 = ssub.s32 %s11, %s18
    %p20 = scmp.eq.s32.totalorder %s19, 0
    %s22 = sadd.s32 %s21, 1
    %s23 = scalar_select %p20, %s21, %s22
    %p26 = pneg %p20
    %p27 = scmp.eq.s32.totalorder %s11, 1
    %p28 = por %p26, %p27
    %p29 = scmp.ne.s32.totalorder %s21, %s24
    %p30 = scmp.eq.s32.totalorder %s11, 0
    %p31 = por %p29, %p30
    %p32 = scmp.ne.s32.totalorder %s21, %s24
    %p33 = scmp.eq.s32.totalorder %s16, 1
    %p34 = por %p32, %p33
    %p35 = scmp.ne.s32.totalorder %s24, %s25
    %p36 = scmp.eq.s32.totalorder %s16, 0
    %p37 = por %p35, %p36
    %p38 = scmp.ne.s32.totalorder %s24, %s25
    %p39 = scmp.eq.s32.totalorder %s17, 1
    %p40 = por %p38, %p39
    %p42 = scmp.ne.s32.totalorder %s25, %s41
    %p43 = scmp.eq.s32.totalorder %s17, 0
    %p44 = por %p42, %p43
    %s46 = sadd.s32 %s45, 1
    %p49 = scmp.eq.s32.totalorder %s11, 1
    %p50 = scmp.ne.s32.totalorder %s45, %s47
    %p51 = scmp.eq.s32.totalorder %s11, 0
    %p52 = por %p50, %p51
    %p53 = scmp.ne.s32.totalorder %s45, %s47
    %p54 = scmp.eq.s32.totalorder %s16, 1
    %p55 = por %p53, %p54
    %p56 = scmp.ne.s32.totalorder %s47, %s48
    %p57 = scmp.eq.s32.totalorder %s16, 0
    %p58 = por %p56, %p57
    %p59 = scmp.ne.s32.totalorder %s47, %s48
    %p60 = scmp.eq.s32.totalorder %s17, 1
    %p61 = por %p59, %p60
    %p63 = scmp.ne.s32.totalorder %s48, %s62
    %p64 = scmp.eq.s32.totalorder %s17, 0
    %p65 = por %p63, %p64
    %s67 = sadd.s32 %s66, 1
    %p70 = scmp.eq.s32.totalorder %s11, 1
    %p71 = scmp.ne.s32.totalorder %s66, %s68
    %p72 = scmp.eq.s32.totalorder %s11, 0
    %p73 = por %p71, %p72
    %p74 = scmp.ne.s32.totalorder %s66, %s68
    %p75 = scmp.eq.s32.totalorder %s16, 1
    %p76 = por %p74, %p75
    %p77 = scmp.ne.s32.totalorder %s68, %s69
    %p78 = scmp.eq.s32.totalorder %s16, 0
    %p79 = por %p77, %p78
    %p80 = scmp.ne.s32.totalorder %s68, %s69
    %p81 = scmp.eq.s32.totalorder %s17, 1
    %p82 = por %p80, %p81
    %p84 = scmp.ne.s32.totalorder %s69, %s83
    %p85 = scmp.eq.s32.totalorder %s17, 0
    %p86 = por %p84, %p85
    %s88 = sadd.s32 %s87, 1
    %p91 = scmp.eq.s32.totalorder %s11, 1
    %p92 = scmp.ne.s32.totalorder %s87, %s89
    %p93 = scmp.eq.s32.totalorder %s11, 0
    %p94 = por %p92, %p93
    %p95 = scmp.ne.s32.totalorder %s87, %s89
    %p96 = scmp.eq.s32.totalorder %s16, 1
    %p97 = por %p95, %p96
    %p98 = scmp.ne.s32.totalorder %s89, %s90
    %p99 = scmp.eq.s32.totalorder %s16, 0
    %p100 = por %p98, %p99
    %p101 = scmp.ne.s32.totalorder %s89, %s90
    %p102 = scmp.eq.s32.totalorder %s17, 1
    %p103 = por %p101, %p102
    %p105 = scmp.ne.s32.totalorder %s90, %s104
    %p106 = scmp.eq.s32.totalorder %s17, 0
    %p107 = por %p105, %p106
    %s109 = sadd.s32 %s108, 1
    %p112 = scmp.eq.s32.totalorder %s11, 1
    %p113 = scmp.ne.s32.totalorder %s108, %s110
    %p114 = scmp.eq.s32.totalorder %s11, 0
    %p115 = por %p113, %p114
    %p116 = scmp.ne.s32.totalorder %s108, %s110
    %p117 = scmp.eq.s32.totalorder %s16, 1
    %p118 = por %p116, %p117
    %p119 = scmp.ne.s32.totalorder %s110, %s111
    %p120 = scmp.eq.s32.totalorder %s16, 0
    %p121 = por %p119, %p120
    %p122 = scmp.ne.s32.totalorder %s110, %s111
    %p123 = scmp.eq.s32.totalorder %s17, 1
    %p124 = por %p122, %p123
    %p126 = scmp.ne.s32.totalorder %s111, %s125
    %p127 = scmp.eq.s32.totalorder %s17, 0
    %p128 = por %p126, %p127
    %s129 = ssub.s32 %s11, %s18
    %p130 = scmp.eq.s32.totalorder %s129, 0
    %s132 = sadd.s32 %s131, 1
    %s133 = scalar_select %p130, %s131, %s132
    %p136 = pneg %p130
    %p137 = scmp.eq.s32.totalorder %s11, 1
    %p138 = por %p136, %p137
    %p139 = scmp.ne.s32.totalorder %s131, %s134
    %p140 = scmp.eq.s32.totalorder %s11, 0
    %p141 = por %p139, %p140
    %p142 = scmp.ne.s32.totalorder %s131, %s134
    %p143 = scmp.eq.s32.totalorder %s16, 1
    %p144 = por %p142, %p143
    %p145 = scmp.ne.s32.totalorder %s134, %s135
    %p146 = scmp.eq.s32.totalorder %s16, 0
    %p147 = por %p145, %p146
    %p148 = scmp.ne.s32.totalorder %s134, %s135
    %p149 = scmp.eq.s32.totalorder %s17, 1
    %p150 = por %p148, %p149
    %p152 = scmp.ne.s32.totalorder %s135, %s151
    %p153 = scmp.eq.s32.totalorder %s17, 0
    %p154 = por %p152, %p153
    %p155 = scmp.le.s32.totalorder 1, %s11
    %p156 = scmp.lt.s32.totalorder %s11, 3
    %p157 = pnand %p155, %p156
    %p158 = pneg %p157
    // Predicated region
    $region9: #{cartpole_reinforce_forward.1} parent=5 // pred_check
      _
    $region10: #{cartpole_reinforce_forward.1} parent=5 // pred_check_branch
      %160 = sbr.rel (%p157) target = $region12
    $region11: #{cartpole_reinforce_forward.1} parent=5 // pred_region
      %s161 = ssub.s32 %s11, 1
      // Predicated region
      $region13: #{cartpole_reinforce_forward.1} parent=11 // pred_check
        %p162 = pneg %p58
      $region14: #{cartpole_reinforce_forward.1} parent=11 // pred_check_branch
        %164 = sbr.rel (%p162) target = $region16
      $region15: #{cartpole_reinforce_forward.1} parent=11 // pred_region
        _
      $region16: #{cartpole_reinforce_forward.1} parent=11 // pred_fallthru
        _
      // Predicated region
      $region17: #{cartpole_reinforce_forward.1} parent=11 // pred_check
        %p165 = pneg %p79
      $region18: #{cartpole_reinforce_forward.1} parent=11 // pred_check_branch
        %167 = sbr.rel (%p165) target = $region20
      $region19: #{cartpole_reinforce_forward.1} parent=11 // pred_region
        _
      $region20: #{cartpole_reinforce_forward.1} parent=11 // pred_fallthru
        _
      // Predicated region
      $region21: #{cartpole_reinforce_forward.1} parent=11 // pred_check
        %p168 = pneg %p100
      $region22: #{cartpole_reinforce_forward.1} parent=11 // pred_check_branch
        %170 = sbr.rel (%p168) target = $region24
      $region23: #{cartpole_reinforce_forward.1} parent=11 // pred_region
        _
      $region24: #{cartpole_reinforce_forward.1} parent=11 // pred_fallthru
        _
      // Predicated region
      $region25: #{cartpole_reinforce_forward.1} parent=11 // pred_check
        %p171 = pneg %p121
      $region26: #{cartpole_reinforce_forward.1} parent=11 // pred_check_branch
        %173 = sbr.rel (%p171) target = $region28
      $region27: #{cartpole_reinforce_forward.1} parent=11 // pred_region
        _
      $region28: #{cartpole_reinforce_forward.1} parent=11 // pred_fallthru
        _
    $region12: #{cartpole_reinforce_forward.1} parent=5 // pred_fallthru
      _
    %p174 = scmp.lt.s32.totalorder %s11, 2
    // Predicated region
    $region29: #{cartpole_reinforce_forward.1} parent=5 // pred_check
      %p175 = pneg %p174
    $region30: #{cartpole_reinforce_forward.1} parent=5 // pred_check_branch
      %177 = sbr.rel (%p175) target = $region32
    $region31: #{cartpole_reinforce_forward.1} parent=5 // pred_region
      // Predicated region
      $region33: #{cartpole_reinforce_forward.1} parent=31 // pred_check
        %p178 = pneg %p31
      $region34: #{cartpole_reinforce_forward.1} parent=31 // pred_check_branch
        %180 = sbr.rel (%p178) target = $region36
      $region35: #{cartpole_reinforce_forward.1} parent=31 // pred_region
        %s181 = smul.u32 64, %s11
        %p182 = scmp.lt.s32.totalorder %s181, 127
        %s183 = scalar_select %p182, %s181, 127
        %s184 = smul.addr %s183, 8
        %s185 = scalar_lea.vmem %s0, %s184
        %s186 = smul.u32 64, %s11
      $region36: #{cartpole_reinforce_forward.1} parent=31 // pred_fallthru
        _
    $region32: #{cartpole_reinforce_forward.1} parent=5 // pred_fallthru
      _
    %p187 = scmp.le.s32.totalorder 1, %s11
    %p188 = scmp.lt.s32.totalorder %s11, 3
    %p189 = pnand %p187, %p188
    %p190 = pneg %p189
    // Predicated region
    $region37: #{cartpole_reinforce_forward.1} parent=5 // pred_check
      _
    $region38: #{cartpole_reinforce_forward.1} parent=5 // pred_check_branch
      %192 = sbr.rel (%p189) target = $region40
    $region39: #{cartpole_reinforce_forward.1} parent=5 // pred_region
      %s193 = ssub.s32 %s11, 1
      %s194 = smul.u32 64, %s16
      %p195 = scmp.lt.s32.totalorder %s194, 127
      %s196 = scalar_select %p195, %s194, 127
      %s197 = smul.addr %s196, 8
      %s198 = scalar_lea.vmem %s0, %s197
      %p199 = pneg %p37
      %p200 = pneg %p34
      %p201 = pneg %p58
      %p202 = pneg %p55
      %p203 = pneg %p79
      %p204 = pneg %p76
      %p205 = pneg %p100
      %p206 = pneg %p97
      %p207 = pneg %p121
      %p208 = pneg %p118
      %p209 = pneg %p147
      %p210 = pneg %p144
      %s211 = smul.u32 64, %s16
      %p212 = scmp.lt.s32.totalorder %s211, 127
      %s213 = scalar_select %p212, %s211, 127
      %s214 = smul.addr %s213, 8
      %s215 = scalar_lea.vmem %s5, %s214
      %s216 = smul.u32 64, %s16
      %p217 = scmp.lt.s32.totalorder %s216, 127
      %s218 = scalar_select %p217, %s216, 127
      %s219 = smul.addr %s218, 8
      %s220 = scalar_lea.vmem %s0, %s219
      %s221 = smul.u32 64, %s16
      %s222 = smul.u32 64, %s16
      %p223 = scmp.lt.s32.totalorder %s222, 127
      %s224 = scalar_select %p223, %s222, 127
      %s225 = smul.addr %s224, 8
      %s226 = scalar_lea.vmem %s5, %s225
      %s227 = smul.u32 64, %s16
      %v228 = vld [vmem:[%s220] sm:$0xff]
      %v229 = vld [vmem:[%s220 + $0x8] sm:$0xff]
      %v230 = vld [vmem:[%s220 + $0x10] sm:$0xff]
      %v231 = vld [vmem:[%s220 + $0x18] sm:$0xff]
      %v232 = vld [vmem:[%s220 + $0x20] sm:$0xff]
      %v233 = vld [vmem:[%s220 + $0x28] sm:$0xff]
      %v234 = vld [vmem:[%s220 + $0x30] sm:$0xff]
      %v235 = vld [vmem:[%s220 + $0x38] sm:$0xff]
      %v236 = vld [vmem:[%s220 + $0x40] sm:$0xff]
      %v237 = vld [vmem:[%s220 + $0x48] sm:$0xff]
      %v238 = vld [vmem:[%s220 + $0x50] sm:$0xff]
      %v239 = vld [vmem:[%s220 + $0x58] sm:$0xff]
      %v240 = vld [vmem:[%s220 + $0x60] sm:$0xff]
      %v241 = vld [vmem:[%s220 + $0x68] sm:$0xff]
      %v242 = vld [vmem:[%s220 + $0x70] sm:$0xff]
      %v243 = vld [vmem:[%s220 + $0x78] sm:$0xff]
      %v244 = vld [vmem:[%s220 + $0x80] sm:$0xff]
      %v245 = vld [vmem:[%s220 + $0x88] sm:$0xff]
      %v246 = vld [vmem:[%s220 + $0x90] sm:$0xff]
      %v247 = vld [vmem:[%s220 + $0x98] sm:$0xff]
      %v248 = vld [vmem:[%s220 + $0xa0] sm:$0xff]
      %v249 = vld [vmem:[%s220 + $0xa8] sm:$0xff]
      %v250 = vld [vmem:[%s220 + $0xb0] sm:$0xff]
      %v251 = vld [vmem:[%s220 + $0xb8] sm:$0xff]
      %v252 = vld [vmem:[%s220 + $0xc0] sm:$0xff]
      %v253 = vld [vmem:[%s220 + $0xc8] sm:$0xff]
      %v254 = vld [vmem:[%s220 + $0xd0] sm:$0xff]
      %v255 = vld [vmem:[%s220 + $0xd8] sm:$0xff]
      %v256 = vld [vmem:[%s220 + $0xe0] sm:$0xff]
      %v257 = vld [vmem:[%s220 + $0xe8] sm:$0xff]
      %v258 = vld [vmem:[%s220 + $0xf0] sm:$0xff]
      %v259 = vld [vmem:[%s220 + $0xf8] sm:$0xff]
      %v260 = vld [vmem:[%s220 + $0x100] sm:$0xff]
      %v261 = vld [vmem:[%s220 + $0x108] sm:$0xff]
      %v262 = vld [vmem:[%s220 + $0x110] sm:$0xff]
      %v263 = vld [vmem:[%s220 + $0x118] sm:$0xff]
      %v264 = vld [vmem:[%s220 + $0x120] sm:$0xff]
      %v265 = vld [vmem:[%s220 + $0x128] sm:$0xff]
      %v266 = vld [vmem:[%s220 + $0x130] sm:$0xff]
      %v267 = vld [vmem:[%s220 + $0x138] sm:$0xff]
      %v268 = vld [vmem:[%s220 + $0x140] sm:$0xff]
      %v269 = vld [vmem:[%s220 + $0x148] sm:$0xff]
      %v270 = vld [vmem:[%s220 + $0x150] sm:$0xff]
      %v271 = vld [vmem:[%s220 + $0x158] sm:$0xff]
      %v272 = vld [vmem:[%s220 + $0x160] sm:$0xff]
      %v273 = vld [vmem:[%s220 + $0x168] sm:$0xff]
      %v274 = vld [vmem:[%s220 + $0x170] sm:$0xff]
      %v275 = vld [vmem:[%s220 + $0x178] sm:$0xff]
      %v276 = vld [vmem:[%s220 + $0x180] sm:$0xff]
      %v277 = vld [vmem:[%s220 + $0x188] sm:$0xff]
      %v278 = vld [vmem:[%s220 + $0x190] sm:$0xff]
      %v279 = vld [vmem:[%s220 + $0x198] sm:$0xff]
      %v280 = vld [vmem:[%s220 + $0x1a0] sm:$0xff]
      %v281 = vld [vmem:[%s220 + $0x1a8] sm:$0xff]
      %v282 = vld [vmem:[%s220 + $0x1b0] sm:$0xff]
      %v283 = vld [vmem:[%s220 + $0x1b8] sm:$0xff]
      %v284 = vld [vmem:[%s220 + $0x1c0] sm:$0xff]
      %v285 = vld [vmem:[%s220 + $0x1c8] sm:$0xff]
      %v286 = vld [vmem:[%s220 + $0x1d0] sm:$0xff]
      %v287 = vld [vmem:[%s220 + $0x1d8] sm:$0xff]
      %v288 = vld [vmem:[%s220 + $0x1e0] sm:$0xff]
      %v289 = vld [vmem:[%s220 + $0x1e8] sm:$0xff]
      %v290 = vld [vmem:[%s220 + $0x1f0] sm:$0xff]
      %v291 = vld [vmem:[%s220 + $0x1f8] sm:$0xff]
      %v292 = vld [vmem:[%s1] sm:$0xf]
      %v293 = vld [vmem:[%s2] sm:$0x1]
      %295 = vset.pattern.permute.xlu0 0
      %296 = vperm.xlu0 %295, %v228
      %v297 = vpop.permute.xlu0 %296
      %300 = vset.pattern.permute.xlu0 0
      %301 = vperm.xlu0 %300, %v229
      %v302 = vpop.permute.xlu0 %301
      %305 = vset.pattern.permute.xlu0 0
      %306 = vperm.xlu0 %305, %v230
      %v307 = vpop.permute.xlu0 %306
      %310 = vset.pattern.permute.xlu0 0
      %311 = vperm.xlu0 %310, %v231
      %v312 = vpop.permute.xlu0 %311
      %315 = vset.pattern.permute.xlu0 0
      %316 = vperm.xlu0 %315, %v232
      %v317 = vpop.permute.xlu0 %316
      %320 = vset.pattern.permute.xlu0 0
      %321 = vperm.xlu0 %320, %v233
      %v322 = vpop.permute.xlu0 %321
      %325 = vset.pattern.permute.xlu0 0
      %326 = vperm.xlu0 %325, %v234
      %v327 = vpop.permute.xlu0 %326
      %330 = vset.pattern.permute.xlu0 0
      %331 = vperm.xlu0 %330, %v235
      %v332 = vpop.permute.xlu0 %331
      %335 = vset.pattern.permute.xlu0 0
      %336 = vperm.xlu0 %335, %v236
      %v337 = vpop.permute.xlu0 %336
      %340 = vset.pattern.permute.xlu0 0
      %341 = vperm.xlu0 %340, %v237
      %v342 = vpop.permute.xlu0 %341
      %345 = vset.pattern.permute.xlu0 0
      %346 = vperm.xlu0 %345, %v238
      %v347 = vpop.permute.xlu0 %346
      %350 = vset.pattern.permute.xlu0 0
      %351 = vperm.xlu0 %350, %v239
      %v352 = vpop.permute.xlu0 %351
      %355 = vset.pattern.permute.xlu0 0
      %356 = vperm.xlu0 %355, %v240
      %v357 = vpop.permute.xlu0 %356
      %360 = vset.pattern.permute.xlu0 0
      %361 = vperm.xlu0 %360, %v241
      %v362 = vpop.permute.xlu0 %361
      %365 = vset.pattern.permute.xlu0 0
      %366 = vperm.xlu0 %365, %v242
      %v367 = vpop.permute.xlu0 %366
      %370 = vset.pattern.permute.xlu0 0
      %371 = vperm.xlu0 %370, %v243
      %v372 = vpop.permute.xlu0 %371
      %375 = vset.pattern.permute.xlu0 0
      %376 = vperm.xlu0 %375, %v244
      %v377 = vpop.permute.xlu0 %376
      %380 = vset.pattern.permute.xlu0 0
      %381 = vperm.xlu0 %380, %v245
      %v382 = vpop.permute.xlu0 %381
      %385 = vset.pattern.permute.xlu0 0
      %386 = vperm.xlu0 %385, %v246
      %v387 = vpop.permute.xlu0 %386
      %390 = vset.pattern.permute.xlu0 0
      %391 = vperm.xlu0 %390, %v247
      %v392 = vpop.permute.xlu0 %391
      %395 = vset.pattern.permute.xlu0 0
      %396 = vperm.xlu0 %395, %v248
      %v397 = vpop.permute.xlu0 %396
      %400 = vset.pattern.permute.xlu0 0
      %401 = vperm.xlu0 %400, %v249
      %v402 = vpop.permute.xlu0 %401
      %405 = vset.pattern.permute.xlu0 0
      %406 = vperm.xlu0 %405, %v250
      %v407 = vpop.permute.xlu0 %406
      %410 = vset.pattern.permute.xlu0 0
      %411 = vperm.xlu0 %410, %v251
      %v412 = vpop.permute.xlu0 %411
      %415 = vset.pattern.permute.xlu0 0
      %416 = vperm.xlu0 %415, %v252
      %v417 = vpop.permute.xlu0 %416
      %420 = vset.pattern.permute.xlu0 0
      %421 = vperm.xlu0 %420, %v253
      %v422 = vpop.permute.xlu0 %421
      %425 = vset.pattern.permute.xlu0 0
      %426 = vperm.xlu0 %425, %v254
      %v427 = vpop.permute.xlu0 %426
      %430 = vset.pattern.permute.xlu0 0
      %431 = vperm.xlu0 %430, %v255
      %v432 = vpop.permute.xlu0 %431
      %435 = vset.pattern.permute.xlu0 0
      %436 = vperm.xlu0 %435, %v256
      %v437 = vpop.permute.xlu0 %436
      %440 = vset.pattern.permute.xlu0 0
      %441 = vperm.xlu0 %440, %v257
      %v442 = vpop.permute.xlu0 %441
      %445 = vset.pattern.permute.xlu0 0
      %446 = vperm.xlu0 %445, %v258
      %v447 = vpop.permute.xlu0 %446
      %450 = vset.pattern.permute.xlu0 0
      %451 = vperm.xlu0 %450, %v259
      %v452 = vpop.permute.xlu0 %451
      %455 = vset.pattern.permute.xlu0 0
      %456 = vperm.xlu0 %455, %v260
      %v457 = vpop.permute.xlu0 %456
      %460 = vset.pattern.permute.xlu0 0
      %461 = vperm.xlu0 %460, %v261
      %v462 = vpop.permute.xlu0 %461
      %465 = vset.pattern.permute.xlu0 0
      %466 = vperm.xlu0 %465, %v262
      %v467 = vpop.permute.xlu0 %466
      %470 = vset.pattern.permute.xlu0 0
      %471 = vperm.xlu0 %470, %v263
      %v472 = vpop.permute.xlu0 %471
      %475 = vset.pattern.permute.xlu0 0
      %476 = vperm.xlu0 %475, %v264
      %v477 = vpop.permute.xlu0 %476
      %480 = vset.pattern.permute.xlu0 0
      %481 = vperm.xlu0 %480, %v265
      %v482 = vpop.permute.xlu0 %481
      %485 = vset.pattern.permute.xlu0 0
      %486 = vperm.xlu0 %485, %v266
      %v487 = vpop.permute.xlu0 %486
      %490 = vset.pattern.permute.xlu0 0
      %491 = vperm.xlu0 %490, %v267
      %v492 = vpop.permute.xlu0 %491
      %495 = vset.pattern.permute.xlu0 0
      %496 = vperm.xlu0 %495, %v268
      %v497 = vpop.permute.xlu0 %496
      %500 = vset.pattern.permute.xlu0 0
      %501 = vperm.xlu0 %500, %v269
      %v502 = vpop.permute.xlu0 %501
      %505 = vset.pattern.permute.xlu0 0
      %506 = vperm.xlu0 %505, %v270
      %v507 = vpop.permute.xlu0 %506
      %510 = vset.pattern.permute.xlu0 0
      %511 = vperm.xlu0 %510, %v271
      %v512 = vpop.permute.xlu0 %511
      %515 = vset.pattern.permute.xlu0 0
      %516 = vperm.xlu0 %515, %v272
      %v517 = vpop.permute.xlu0 %516
      %520 = vset.pattern.permute.xlu0 0
      %521 = vperm.xlu0 %520, %v273
      %v522 = vpop.permute.xlu0 %521
      %525 = vset.pattern.permute.xlu0 0
      %526 = vperm.xlu0 %525, %v274
      %v527 = vpop.permute.xlu0 %526
      %530 = vset.pattern.permute.xlu0 0
      %531 = vperm.xlu0 %530, %v275
      %v532 = vpop.permute.xlu0 %531
      %535 = vset.pattern.permute.xlu0 0
      %536 = vperm.xlu0 %535, %v276
      %v537 = vpop.permute.xlu0 %536
      %540 = vset.pattern.permute.xlu0 0
      %541 = vperm.xlu0 %540, %v277
      %v542 = vpop.permute.xlu0 %541
      %545 = vset.pattern.permute.xlu0 0
      %546 = vperm.xlu0 %545, %v278
      %v547 = vpop.permute.xlu0 %546
      %550 = vset.pattern.permute.xlu0 0
      %551 = vperm.xlu0 %550, %v279
      %v552 = vpop.permute.xlu0 %551
      %555 = vset.pattern.permute.xlu0 0
      %556 = vperm.xlu0 %555, %v280
      %v557 = vpop.permute.xlu0 %556
      %560 = vset.pattern.permute.xlu0 0
      %561 = vperm.xlu0 %560, %v281
      %v562 = vpop.permute.xlu0 %561
      %565 = vset.pattern.permute.xlu0 0
      %566 = vperm.xlu0 %565, %v282
      %v567 = vpop.permute.xlu0 %566
      %570 = vset.pattern.permute.xlu0 0
      %571 = vperm.xlu0 %570, %v283
      %v572 = vpop.permute.xlu0 %571
      %575 = vset.pattern.permute.xlu0 0
      %576 = vperm.xlu0 %575, %v284
      %v577 = vpop.permute.xlu0 %576
      %580 = vset.pattern.permute.xlu0 0
      %581 = vperm.xlu0 %580, %v285
      %v582 = vpop.permute.xlu0 %581
      %585 = vset.pattern.permute.xlu0 0
      %586 = vperm.xlu0 %585, %v286
      %v587 = vpop.permute.xlu0 %586
      %590 = vset.pattern.permute.xlu0 0
      %591 = vperm.xlu0 %590, %v287
      %v592 = vpop.permute.xlu0 %591
      %595 = vset.pattern.permute.xlu0 0
      %596 = vperm.xlu0 %595, %v288
      %v597 = vpop.permute.xlu0 %596
      %600 = vset.pattern.permute.xlu0 0
      %601 = vperm.xlu0 %600, %v289
      %v602 = vpop.permute.xlu0 %601
      %605 = vset.pattern.permute.xlu0 0
      %606 = vperm.xlu0 %605, %v290
      %v607 = vpop.permute.xlu0 %606
      %610 = vset.pattern.permute.xlu0 0
      %611 = vperm.xlu0 %610, %v291
      %v612 = vpop.permute.xlu0 %611
      %v614 = vperm.slane %v292, 0
      %v615 = vmul.f32 %v297, %v614
      %v616 = vmul.f32 %v302, %v614
      %v617 = vmul.f32 %v307, %v614
      %v618 = vmul.f32 %v312, %v614
      %v619 = vmul.f32 %v317, %v614
      %v620 = vmul.f32 %v322, %v614
      %v621 = vmul.f32 %v327, %v614
      %v622 = vmul.f32 %v332, %v614
      %v623 = vmul.f32 %v337, %v614
      %v624 = vmul.f32 %v342, %v614
      %v625 = vmul.f32 %v347, %v614
      %v626 = vmul.f32 %v352, %v614
      %v627 = vmul.f32 %v357, %v614
      %v628 = vmul.f32 %v362, %v614
      %v629 = vmul.f32 %v367, %v614
      %v630 = vmul.f32 %v372, %v614
      %v631 = vmul.f32 %v377, %v614
      %v632 = vmul.f32 %v382, %v614
      %v633 = vmul.f32 %v387, %v614
      %v634 = vmul.f32 %v392, %v614
      %v635 = vmul.f32 %v397, %v614
      %v636 = vmul.f32 %v402, %v614
      %v637 = vmul.f32 %v407, %v614
      %v638 = vmul.f32 %v412, %v614
      %v639 = vmul.f32 %v417, %v614
      %v640 = vmul.f32 %v422, %v614
      %v641 = vmul.f32 %v427, %v614
      %v642 = vmul.f32 %v432, %v614
      %v643 = vmul.f32 %v437, %v614
      %v644 = vmul.f32 %v442, %v614
      %v645 = vmul.f32 %v447, %v614
      %v646 = vmul.f32 %v452, %v614
      %v647 = vmul.f32 %v457, %v614
      %v648 = vmul.f32 %v462, %v614
      %v649 = vmul.f32 %v467, %v614
      %v650 = vmul.f32 %v472, %v614
      %v651 = vmul.f32 %v477, %v614
      %v652 = vmul.f32 %v482, %v614
      %v653 = vmul.f32 %v487, %v614
      %v654 = vmul.f32 %v492, %v614
      %v655 = vmul.f32 %v497, %v614
      %v656 = vmul.f32 %v502, %v614
      %v657 = vmul.f32 %v507, %v614
      %v658 = vmul.f32 %v512, %v614
      %v659 = vmul.f32 %v517, %v614
      %v660 = vmul.f32 %v522, %v614
      %v661 = vmul.f32 %v527, %v614
      %v662 = vmul.f32 %v532, %v614
      %v663 = vmul.f32 %v537, %v614
      %v664 = vmul.f32 %v542, %v614
      %v665 = vmul.f32 %v547, %v614
      %v666 = vmul.f32 %v552, %v614
      %v667 = vmul.f32 %v557, %v614
      %v668 = vmul.f32 %v562, %v614
      %v669 = vmul.f32 %v567, %v614
      %v670 = vmul.f32 %v572, %v614
      %v671 = vmul.f32 %v577, %v614
      %v672 = vmul.f32 %v582, %v614
      %v673 = vmul.f32 %v587, %v614
      %v674 = vmul.f32 %v592, %v614
      %v675 = vmul.f32 %v597, %v614
      %v676 = vmul.f32 %v602, %v614
      %v677 = vmul.f32 %v607, %v614
      %v678 = vmul.f32 %v612, %v614
      %v680 = vperm.slane %v293, 0
      %v682 = vadd.f32 %v680, %v615
      %v683 = vadd.f32 %v680, %v616
      %v684 = vadd.f32 %v680, %v617
      %v685 = vadd.f32 %v680, %v618
      %v686 = vadd.f32 %v680, %v619
      %v687 = vadd.f32 %v680, %v620
      %v688 = vadd.f32 %v680, %v621
      %v689 = vadd.f32 %v680, %v622
      %v690 = vadd.f32 %v680, %v623
      %v691 = vadd.f32 %v680, %v624
      %v692 = vadd.f32 %v680, %v625
      %v693 = vadd.f32 %v680, %v626
      %v694 = vadd.f32 %v680, %v627
      %v695 = vadd.f32 %v680, %v628
      %v696 = vadd.f32 %v680, %v629
      %v697 = vadd.f32 %v680, %v630
      %v698 = vadd.f32 %v680, %v631
      %v699 = vadd.f32 %v680, %v632
      %v700 = vadd.f32 %v680, %v633
      %v701 = vadd.f32 %v680, %v634
      %v702 = vadd.f32 %v680, %v635
      %v703 = vadd.f32 %v680, %v636
      %v704 = vadd.f32 %v680, %v637
      %v705 = vadd.f32 %v680, %v638
      %v706 = vadd.f32 %v680, %v639
      %v707 = vadd.f32 %v680, %v640
      %v708 = vadd.f32 %v680, %v641
      %v709 = vadd.f32 %v680, %v642
      %v710 = vadd.f32 %v680, %v643
      %v711 = vadd.f32 %v680, %v644
      %v712 = vadd.f32 %v680, %v645
      %v713 = vadd.f32 %v680, %v646
      %v714 = vadd.f32 %v680, %v647
      %v715 = vadd.f32 %v680, %v648
      %v716 = vadd.f32 %v680, %v649
      %v717 = vadd.f32 %v680, %v650
      %v718 = vadd.f32 %v680, %v651
      %v719 = vadd.f32 %v680, %v652
      %v720 = vadd.f32 %v680, %v653
      %v721 = vadd.f32 %v680, %v654
      %v722 = vadd.f32 %v680, %v655
      %v723 = vadd.f32 %v680, %v656
      %v724 = vadd.f32 %v680, %v657
      %v725 = vadd.f32 %v680, %v658
      %v726 = vadd.f32 %v680, %v659
      %v727 = vadd.f32 %v680, %v660
      %v728 = vadd.f32 %v680, %v661
      %v729 = vadd.f32 %v680, %v662
      %v730 = vadd.f32 %v680, %v663
      %v731 = vadd.f32 %v680, %v664
      %v732 = vadd.f32 %v680, %v665
      %v733 = vadd.f32 %v680, %v666
      %v734 = vadd.f32 %v680, %v667
      %v735 = vadd.f32 %v680, %v668
      %v736 = vadd.f32 %v680, %v669
      %v737 = vadd.f32 %v680, %v670
      %v738 = vadd.f32 %v680, %v671
      %v739 = vadd.f32 %v680, %v672
      %v740 = vadd.f32 %v680, %v673
      %v741 = vadd.f32 %v680, %v674
      %v742 = vadd.f32 %v680, %v675
      %v743 = vadd.f32 %v680, %v676
      %v744 = vadd.f32 %v680, %v677
      %v745 = vadd.f32 %v680, %v678
      %746 = vset.pattern.permute.xlu0 1
      %747 = vperm.xlu0 %746, %v228
      %v748 = vpop.permute.xlu0 %747
      %750 = vset.pattern.permute.xlu0 1
      %751 = vperm.xlu0 %750, %v229
      %v752 = vpop.permute.xlu0 %751
      %754 = vset.pattern.permute.xlu0 1
      %755 = vperm.xlu0 %754, %v230
      %v756 = vpop.permute.xlu0 %755
      %758 = vset.pattern.permute.xlu0 1
      %759 = vperm.xlu0 %758, %v231
      %v760 = vpop.permute.xlu0 %759
      %762 = vset.pattern.permute.xlu0 1
      %763 = vperm.xlu0 %762, %v232
      %v764 = vpop.permute.xlu0 %763
      %766 = vset.pattern.permute.xlu0 1
      %767 = vperm.xlu0 %766, %v233
      %v768 = vpop.permute.xlu0 %767
      %770 = vset.pattern.permute.xlu0 1
      %771 = vperm.xlu0 %770, %v234
      %v772 = vpop.permute.xlu0 %771
      %774 = vset.pattern.permute.xlu0 1
      %775 = vperm.xlu0 %774, %v235
      %v776 = vpop.permute.xlu0 %775
      %778 = vset.pattern.permute.xlu0 1
      %779 = vperm.xlu0 %778, %v236
      %v780 = vpop.permute.xlu0 %779
      %782 = vset.pattern.permute.xlu0 1
      %783 = vperm.xlu0 %782, %v237
      %v784 = vpop.permute.xlu0 %783
      %786 = vset.pattern.permute.xlu0 1
      %787 = vperm.xlu0 %786, %v238
      %v788 = vpop.permute.xlu0 %787
      %790 = vset.pattern.permute.xlu0 1
      %791 = vperm.xlu0 %790, %v239
      %v792 = vpop.permute.xlu0 %791
      %794 = vset.pattern.permute.xlu0 1
      %795 = vperm.xlu0 %794, %v240
      %v796 = vpop.permute.xlu0 %795
      %798 = vset.pattern.permute.xlu0 1
      %799 = vperm.xlu0 %798, %v241
      %v800 = vpop.permute.xlu0 %799
      %802 = vset.pattern.permute.xlu0 1
      %803 = vperm.xlu0 %802, %v242
      %v804 = vpop.permute.xlu0 %803
      %806 = vset.pattern.permute.xlu0 1
      %807 = vperm.xlu0 %806, %v243
      %v808 = vpop.permute.xlu0 %807
      %810 = vset.pattern.permute.xlu0 1
      %811 = vperm.xlu0 %810, %v244
      %v812 = vpop.permute.xlu0 %811
      %814 = vset.pattern.permute.xlu0 1
      %815 = vperm.xlu0 %814, %v245
      %v816 = vpop.permute.xlu0 %815
      %818 = vset.pattern.permute.xlu0 1
      %819 = vperm.xlu0 %818, %v246
      %v820 = vpop.permute.xlu0 %819
      %822 = vset.pattern.permute.xlu0 1
      %823 = vperm.xlu0 %822, %v247
      %v824 = vpop.permute.xlu0 %823
      %826 = vset.pattern.permute.xlu0 1
      %827 = vperm.xlu0 %826, %v248
      %v828 = vpop.permute.xlu0 %827
      %830 = vset.pattern.permute.xlu0 1
      %831 = vperm.xlu0 %830, %v249
      %v832 = vpop.permute.xlu0 %831
      %834 = vset.pattern.permute.xlu0 1
      %835 = vperm.xlu0 %834, %v250
      %v836 = vpop.permute.xlu0 %835
      %838 = vset.pattern.permute.xlu0 1
      %839 = vperm.xlu0 %838, %v251
      %v840 = vpop.permute.xlu0 %839
      %842 = vset.pattern.permute.xlu0 1
      %843 = vperm.xlu0 %842, %v252
      %v844 = vpop.permute.xlu0 %843
      %846 = vset.pattern.permute.xlu0 1
      %847 = vperm.xlu0 %846, %v253
      %v848 = vpop.permute.xlu0 %847
      %850 = vset.pattern.permute.xlu0 1
      %851 = vperm.xlu0 %850, %v254
      %v852 = vpop.permute.xlu0 %851
      %854 = vset.pattern.permute.xlu0 1
      %855 = vperm.xlu0 %854, %v255
      %v856 = vpop.permute.xlu0 %855
      %858 = vset.pattern.permute.xlu0 1
      %859 = vperm.xlu0 %858, %v256
      %v860 = vpop.permute.xlu0 %859
      %862 = vset.pattern.permute.xlu0 1
      %863 = vperm.xlu0 %862, %v257
      %v864 = vpop.permute.xlu0 %863
      %866 = vset.pattern.permute.xlu0 1
      %867 = vperm.xlu0 %866, %v258
      %v868 = vpop.permute.xlu0 %867
      %870 = vset.pattern.permute.xlu0 1
      %871 = vperm.xlu0 %870, %v259
      %v872 = vpop.permute.xlu0 %871
      %874 = vset.pattern.permute.xlu0 1
      %875 = vperm.xlu0 %874, %v260
      %v876 = vpop.permute.xlu0 %875
      %878 = vset.pattern.permute.xlu0 1
      %879 = vperm.xlu0 %878, %v261
      %v880 = vpop.permute.xlu0 %879
      %882 = vset.pattern.permute.xlu0 1
      %883 = vperm.xlu0 %882, %v262
      %v884 = vpop.permute.xlu0 %883
      %886 = vset.pattern.permute.xlu0 1
      %887 = vperm.xlu0 %886, %v263
      %v888 = vpop.permute.xlu0 %887
      %890 = vset.pattern.permute.xlu0 1
      %891 = vperm.xlu0 %890, %v264
      %v892 = vpop.permute.xlu0 %891
      %894 = vset.pattern.permute.xlu0 1
      %895 = vperm.xlu0 %894, %v265
      %v896 = vpop.permute.xlu0 %895
      %898 = vset.pattern.permute.xlu0 1
      %899 = vperm.xlu0 %898, %v266
      %v900 = vpop.permute.xlu0 %899
      %902 = vset.pattern.permute.xlu0 1
      %903 = vperm.xlu0 %902, %v267
      %v904 = vpop.permute.xlu0 %903
      %906 = vset.pattern.permute.xlu0 1
      %907 = vperm.xlu0 %906, %v268
      %v908 = vpop.permute.xlu0 %907
      %910 = vset.pattern.permute.xlu0 1
      %911 = vperm.xlu0 %910, %v269
      %v912 = vpop.permute.xlu0 %911
      %914 = vset.pattern.permute.xlu0 1
      %915 = vperm.xlu0 %914, %v270
      %v916 = vpop.permute.xlu0 %915
      %918 = vset.pattern.permute.xlu0 1
      %919 = vperm.xlu0 %918, %v271
      %v920 = vpop.permute.xlu0 %919
      %922 = vset.pattern.permute.xlu0 1
      %923 = vperm.xlu0 %922, %v272
      %v924 = vpop.permute.xlu0 %923
      %926 = vset.pattern.permute.xlu0 1
      %927 = vperm.xlu0 %926, %v273
      %v928 = vpop.permute.xlu0 %927
      %930 = vset.pattern.permute.xlu0 1
      %931 = vperm.xlu0 %930, %v274
      %v932 = vpop.permute.xlu0 %931
      %934 = vset.pattern.permute.xlu0 1
      %935 = vperm.xlu0 %934, %v275
      %v936 = vpop.permute.xlu0 %935
      %938 = vset.pattern.permute.xlu0 1
      %939 = vperm.xlu0 %938, %v276
      %v940 = vpop.permute.xlu0 %939
      %942 = vset.pattern.permute.xlu0 1
      %943 = vperm.xlu0 %942, %v277
      %v944 = vpop.permute.xlu0 %943
      %946 = vset.pattern.permute.xlu0 1
      %947 = vperm.xlu0 %946, %v278
      %v948 = vpop.permute.xlu0 %947
      %950 = vset.pattern.permute.xlu0 1
      %951 = vperm.xlu0 %950, %v279
      %v952 = vpop.permute.xlu0 %951
      %954 = vset.pattern.permute.xlu0 1
      %955 = vperm.xlu0 %954, %v280
      %v956 = vpop.permute.xlu0 %955
      %958 = vset.pattern.permute.xlu0 1
      %959 = vperm.xlu0 %958, %v281
      %v960 = vpop.permute.xlu0 %959
      %962 = vset.pattern.permute.xlu0 1
      %963 = vperm.xlu0 %962, %v282
      %v964 = vpop.permute.xlu0 %963
      %966 = vset.pattern.permute.xlu0 1
      %967 = vperm.xlu0 %966, %v283
      %v968 = vpop.permute.xlu0 %967
      %970 = vset.pattern.permute.xlu0 1
      %971 = vperm.xlu0 %970, %v284
      %v972 = vpop.permute.xlu0 %971
      %974 = vset.pattern.permute.xlu0 1
      %975 = vperm.xlu0 %974, %v285
      %v976 = vpop.permute.xlu0 %975
      %978 = vset.pattern.permute.xlu0 1
      %979 = vperm.xlu0 %978, %v286
      %v980 = vpop.permute.xlu0 %979
      %982 = vset.pattern.permute.xlu0 1
      %983 = vperm.xlu0 %982, %v287
      %v984 = vpop.permute.xlu0 %983
      %986 = vset.pattern.permute.xlu0 1
      %987 = vperm.xlu0 %986, %v288
      %v988 = vpop.permute.xlu0 %987
      %990 = vset.pattern.permute.xlu0 1
      %991 = vperm.xlu0 %990, %v289
      %v992 = vpop.permute.xlu0 %991
      %994 = vset.pattern.permute.xlu0 1
      %995 = vperm.xlu0 %994, %v290
      %v996 = vpop.permute.xlu0 %995
      %998 = vset.pattern.permute.xlu0 1
      %999 = vperm.xlu0 %998, %v291
      %v1000 = vpop.permute.xlu0 %999
      %v1002 = vperm.slane %v292, 1
      %v1003 = vmul.f32 %v748, %v1002
      %v1004 = vmul.f32 %v752, %v1002
      %v1005 = vmul.f32 %v756, %v1002
      %v1006 = vmul.f32 %v760, %v1002
      %v1007 = vmul.f32 %v764, %v1002
      %v1008 = vmul.f32 %v768, %v1002
      %v1009 = vmul.f32 %v772, %v1002
      %v1010 = vmul.f32 %v776, %v1002
      %v1011 = vmul.f32 %v780, %v1002
      %v1012 = vmul.f32 %v784, %v1002
      %v1013 = vmul.f32 %v788, %v1002
      %v1014 = vmul.f32 %v792, %v1002
      %v1015 = vmul.f32 %v796, %v1002
      %v1016 = vmul.f32 %v800, %v1002
      %v1017 = vmul.f32 %v804, %v1002
      %v1018 = vmul.f32 %v808, %v1002
      %v1019 = vmul.f32 %v812, %v1002
      %v1020 = vmul.f32 %v816, %v1002
      %v1021 = vmul.f32 %v820, %v1002
      %v1022 = vmul.f32 %v824, %v1002
      %v1023 = vmul.f32 %v828, %v1002
      %v1024 = vmul.f32 %v832, %v1002
      %v1025 = vmul.f32 %v836, %v1002
      %v1026 = vmul.f32 %v840, %v1002
      %v1027 = vmul.f32 %v844, %v1002
      %v1028 = vmul.f32 %v848, %v1002
      %v1029 = vmul.f32 %v852, %v1002
      %v1030 = vmul.f32 %v856, %v1002
      %v1031 = vmul.f32 %v860, %v1002
      %v1032 = vmul.f32 %v864, %v1002
      %v1033 = vmul.f32 %v868, %v1002
      %v1034 = vmul.f32 %v872, %v1002
      %v1035 = vmul.f32 %v876, %v1002
      %v1036 = vmul.f32 %v880, %v1002
      %v1037 = vmul.f32 %v884, %v1002
      %v1038 = vmul.f32 %v888, %v1002
      %v1039 = vmul.f32 %v892, %v1002
      %v1040 = vmul.f32 %v896, %v1002
      %v1041 = vmul.f32 %v900, %v1002
      %v1042 = vmul.f32 %v904, %v1002
      %v1043 = vmul.f32 %v908, %v1002
      %v1044 = vmul.f32 %v912, %v1002
      %v1045 = vmul.f32 %v916, %v1002
      %v1046 = vmul.f32 %v920, %v1002
      %v1047 = vmul.f32 %v924, %v1002
      %v1048 = vmul.f32 %v928, %v1002
      %v1049 = vmul.f32 %v932, %v1002
      %v1050 = vmul.f32 %v936, %v1002
      %v1051 = vmul.f32 %v940, %v1002
      %v1052 = vmul.f32 %v944, %v1002
      %v1053 = vmul.f32 %v948, %v1002
      %v1054 = vmul.f32 %v952, %v1002
      %v1055 = vmul.f32 %v956, %v1002
      %v1056 = vmul.f32 %v960, %v1002
      %v1057 = vmul.f32 %v964, %v1002
      %v1058 = vmul.f32 %v968, %v1002
      %v1059 = vmul.f32 %v972, %v1002
      %v1060 = vmul.f32 %v976, %v1002
      %v1061 = vmul.f32 %v980, %v1002
      %v1062 = vmul.f32 %v984, %v1002
      %v1063 = vmul.f32 %v988, %v1002
      %v1064 = vmul.f32 %v992, %v1002
      %v1065 = vmul.f32 %v996, %v1002
      %v1066 = vmul.f32 %v1000, %v1002
      %v1067 = vadd.f32 %v682, %v1003
      %v1068 = vadd.f32 %v683, %v1004
      %v1069 = vadd.f32 %v684, %v1005
      %v1070 = vadd.f32 %v685, %v1006
      %v1071 = vadd.f32 %v686, %v1007
      %v1072 = vadd.f32 %v687, %v1008
      %v1073 = vadd.f32 %v688, %v1009
      %v1074 = vadd.f32 %v689, %v1010
      %v1075 = vadd.f32 %v690, %v1011
      %v1076 = vadd.f32 %v691, %v1012
      %v1077 = vadd.f32 %v692, %v1013
      %v1078 = vadd.f32 %v693, %v1014
      %v1079 = vadd.f32 %v694, %v1015
      %v1080 = vadd.f32 %v695, %v1016
      %v1081 = vadd.f32 %v696, %v1017
      %v1082 = vadd.f32 %v697, %v1018
      %v1083 = vadd.f32 %v698, %v1019
      %v1084 = vadd.f32 %v699, %v1020
      %v1085 = vadd.f32 %v700, %v1021
      %v1086 = vadd.f32 %v701, %v1022
      %v1087 = vadd.f32 %v702, %v1023
      %v1088 = vadd.f32 %v703, %v1024
      %v1089 = vadd.f32 %v704, %v1025
      %v1090 = vadd.f32 %v705, %v1026
      %v1091 = vadd.f32 %v706, %v1027
      %v1092 = vadd.f32 %v707, %v1028
      %v1093 = vadd.f32 %v708, %v1029
      %v1094 = vadd.f32 %v709, %v1030
      %v1095 = vadd.f32 %v710, %v1031
      %v1096 = vadd.f32 %v711, %v1032
      %v1097 = vadd.f32 %v712, %v1033
      %v1098 = vadd.f32 %v713, %v1034
      %v1099 = vadd.f32 %v714, %v1035
      %v1100 = vadd.f32 %v715, %v1036
      %v1101 = vadd.f32 %v716, %v1037
      %v1102 = vadd.f32 %v717, %v1038
      %v1103 = vadd.f32 %v718, %v1039
      %v1104 = vadd.f32 %v719, %v1040
      %v1105 = vadd.f32 %v720, %v1041
      %v1106 = vadd.f32 %v721, %v1042
      %v1107 = vadd.f32 %v722, %v1043
      %v1108 = vadd.f32 %v723, %v1044
      %v1109 = vadd.f32 %v724, %v1045
      %v1110 = vadd.f32 %v725, %v1046
      %v1111 = vadd.f32 %v726, %v1047
      %v1112 = vadd.f32 %v727, %v1048
      %v1113 = vadd.f32 %v728, %v1049
      %v1114 = vadd.f32 %v729, %v1050
      %v1115 = vadd.f32 %v730, %v1051
      %v1116 = vadd.f32 %v731, %v1052
      %v1117 = vadd.f32 %v732, %v1053
      %v1118 = vadd.f32 %v733, %v1054
      %v1119 = vadd.f32 %v734, %v1055
      %v1120 = vadd.f32 %v735, %v1056
      %v1121 = vadd.f32 %v736, %v1057
      %v1122 = vadd.f32 %v737, %v1058
      %v1123 = vadd.f32 %v738, %v1059
      %v1124 = vadd.f32 %v739, %v1060
      %v1125 = vadd.f32 %v740, %v1061
      %v1126 = vadd.f32 %v741, %v1062
      %v1127 = vadd.f32 %v742, %v1063
      %v1128 = vadd.f32 %v743, %v1064
      %v1129 = vadd.f32 %v744, %v1065
      %v1130 = vadd.f32 %v745, %v1066
      %1131 = vset.pattern.permute.xlu0 2
      %1132 = vperm.xlu0 %1131, %v228
      %v1133 = vpop.permute.xlu0 %1132
      %1135 = vset.pattern.permute.xlu0 2
      %1136 = vperm.xlu0 %1135, %v229
      %v1137 = vpop.permute.xlu0 %1136
      %1139 = vset.pattern.permute.xlu0 2
      %1140 = vperm.xlu0 %1139, %v230
      %v1141 = vpop.permute.xlu0 %1140
      %1143 = vset.pattern.permute.xlu0 2
      %1144 = vperm.xlu0 %1143, %v231
      %v1145 = vpop.permute.xlu0 %1144
      %1147 = vset.pattern.permute.xlu0 2
      %1148 = vperm.xlu0 %1147, %v232
      %v1149 = vpop.permute.xlu0 %1148
      %1151 = vset.pattern.permute.xlu0 2
      %1152 = vperm.xlu0 %1151, %v233
      %v1153 = vpop.permute.xlu0 %1152
      %1155 = vset.pattern.permute.xlu0 2
      %1156 = vperm.xlu0 %1155, %v234
      %v1157 = vpop.permute.xlu0 %1156
      %1159 = vset.pattern.permute.xlu0 2
      %1160 = vperm.xlu0 %1159, %v235
      %v1161 = vpop.permute.xlu0 %1160
      %1163 = vset.pattern.permute.xlu0 2
      %1164 = vperm.xlu0 %1163, %v236
      %v1165 = vpop.permute.xlu0 %1164
      %1167 = vset.pattern.permute.xlu0 2
      %1168 = vperm.xlu0 %1167, %v237
      %v1169 = vpop.permute.xlu0 %1168
      %1171 = vset.pattern.permute.xlu0 2
      %1172 = vperm.xlu0 %1171, %v238
      %v1173 = vpop.permute.xlu0 %1172
      %1175 = vset.pattern.permute.xlu0 2
      %1176 = vperm.xlu0 %1175, %v239
      %v1177 = vpop.permute.xlu0 %1176
      %1179 = vset.pattern.permute.xlu0 2
      %1180 = vperm.xlu0 %1179, %v240
      %v1181 = vpop.permute.xlu0 %1180
      %1183 = vset.pattern.permute.xlu0 2
      %1184 = vperm.xlu0 %1183, %v241
      %v1185 = vpop.permute.xlu0 %1184
      %1187 = vset.pattern.permute.xlu0 2
      %1188 = vperm.xlu0 %1187, %v242
      %v1189 = vpop.permute.xlu0 %1188
      %1191 = vset.pattern.permute.xlu0 2
      %1192 = vperm.xlu0 %1191, %v243
      %v1193 = vpop.permute.xlu0 %1192
      %1195 = vset.pattern.permute.xlu0 2
      %1196 = vperm.xlu0 %1195, %v244
      %v1197 = vpop.permute.xlu0 %1196
      %1199 = vset.pattern.permute.xlu0 2
      %1200 = vperm.xlu0 %1199, %v245
      %v1201 = vpop.permute.xlu0 %1200
      %1203 = vset.pattern.permute.xlu0 2
      %1204 = vperm.xlu0 %1203, %v246
      %v1205 = vpop.permute.xlu0 %1204
      %1207 = vset.pattern.permute.xlu0 2
      %1208 = vperm.xlu0 %1207, %v247
      %v1209 = vpop.permute.xlu0 %1208
      %1211 = vset.pattern.permute.xlu0 2
      %1212 = vperm.xlu0 %1211, %v248
      %v1213 = vpop.permute.xlu0 %1212
      %1215 = vset.pattern.permute.xlu0 2
      %1216 = vperm.xlu0 %1215, %v249
      %v1217 = vpop.permute.xlu0 %1216
      %1219 = vset.pattern.permute.xlu0 2
      %1220 = vperm.xlu0 %1219, %v250
      %v1221 = vpop.permute.xlu0 %1220
      %1223 = vset.pattern.permute.xlu0 2
      %1224 = vperm.xlu0 %1223, %v251
      %v1225 = vpop.permute.xlu0 %1224
      %1227 = vset.pattern.permute.xlu0 2
      %1228 = vperm.xlu0 %1227, %v252
      %v1229 = vpop.permute.xlu0 %1228
      %1231 = vset.pattern.permute.xlu0 2
      %1232 = vperm.xlu0 %1231, %v253
      %v1233 = vpop.permute.xlu0 %1232
      %1235 = vset.pattern.permute.xlu0 2
      %1236 = vperm.xlu0 %1235, %v254
      %v1237 = vpop.permute.xlu0 %1236
      %1239 = vset.pattern.permute.xlu0 2
      %1240 = vperm.xlu0 %1239, %v255
      %v1241 = vpop.permute.xlu0 %1240
      %1243 = vset.pattern.permute.xlu0 2
      %1244 = vperm.xlu0 %1243, %v256
      %v1245 = vpop.permute.xlu0 %1244
      %1247 = vset.pattern.permute.xlu0 2
      %1248 = vperm.xlu0 %1247, %v257
      %v1249 = vpop.permute.xlu0 %1248
      %1251 = vset.pattern.permute.xlu0 2
      %1252 = vperm.xlu0 %1251, %v258
      %v1253 = vpop.permute.xlu0 %1252
      %1255 = vset.pattern.permute.xlu0 2
      %1256 = vperm.xlu0 %1255, %v259
      %v1257 = vpop.permute.xlu0 %1256
      %1259 = vset.pattern.permute.xlu0 2
      %1260 = vperm.xlu0 %1259, %v260
      %v1261 = vpop.permute.xlu0 %1260
      %1263 = vset.pattern.permute.xlu0 2
      %1264 = vperm.xlu0 %1263, %v261
      %v1265 = vpop.permute.xlu0 %1264
      %1267 = vset.pattern.permute.xlu0 2
      %1268 = vperm.xlu0 %1267, %v262
      %v1269 = vpop.permute.xlu0 %1268
      %1271 = vset.pattern.permute.xlu0 2
      %1272 = vperm.xlu0 %1271, %v263
      %v1273 = vpop.permute.xlu0 %1272
      %1275 = vset.pattern.permute.xlu0 2
      %1276 = vperm.xlu0 %1275, %v264
      %v1277 = vpop.permute.xlu0 %1276
      %1279 = vset.pattern.permute.xlu0 2
      %1280 = vperm.xlu0 %1279, %v265
      %v1281 = vpop.permute.xlu0 %1280
      %1283 = vset.pattern.permute.xlu0 2
      %1284 = vperm.xlu0 %1283, %v266
      %v1285 = vpop.permute.xlu0 %1284
      %1287 = vset.pattern.permute.xlu0 2
      %1288 = vperm.xlu0 %1287, %v267
      %v1289 = vpop.permute.xlu0 %1288
      %1291 = vset.pattern.permute.xlu0 2
      %1292 = vperm.xlu0 %1291, %v268
      %v1293 = vpop.permute.xlu0 %1292
      %1295 = vset.pattern.permute.xlu0 2
      %1296 = vperm.xlu0 %1295, %v269
      %v1297 = vpop.permute.xlu0 %1296
      %1299 = vset.pattern.permute.xlu0 2
      %1300 = vperm.xlu0 %1299, %v270
      %v1301 = vpop.permute.xlu0 %1300
      %1303 = vset.pattern.permute.xlu0 2
      %1304 = vperm.xlu0 %1303, %v271
      %v1305 = vpop.permute.xlu0 %1304
      %1307 = vset.pattern.permute.xlu0 2
      %1308 = vperm.xlu0 %1307, %v272
      %v1309 = vpop.permute.xlu0 %1308
      %1311 = vset.pattern.permute.xlu0 2
      %1312 = vperm.xlu0 %1311, %v273
      %v1313 = vpop.permute.xlu0 %1312
      %1315 = vset.pattern.permute.xlu0 2
      %1316 = vperm.xlu0 %1315, %v274
      %v1317 = vpop.permute.xlu0 %1316
      %1319 = vset.pattern.permute.xlu0 2
      %1320 = vperm.xlu0 %1319, %v275
      %v1321 = vpop.permute.xlu0 %1320
      %1323 = vset.pattern.permute.xlu0 2
      %1324 = vperm.xlu0 %1323, %v276
      %v1325 = vpop.permute.xlu0 %1324
      %1327 = vset.pattern.permute.xlu0 2
      %1328 = vperm.xlu0 %1327, %v277
      %v1329 = vpop.permute.xlu0 %1328
      %1331 = vset.pattern.permute.xlu0 2
      %1332 = vperm.xlu0 %1331, %v278
      %v1333 = vpop.permute.xlu0 %1332
      %1335 = vset.pattern.permute.xlu0 2
      %1336 = vperm.xlu0 %1335, %v279
      %v1337 = vpop.permute.xlu0 %1336
      %1339 = vset.pattern.permute.xlu0 2
      %1340 = vperm.xlu0 %1339, %v280
      %v1341 = vpop.permute.xlu0 %1340
      %1343 = vset.pattern.permute.xlu0 2
      %1344 = vperm.xlu0 %1343, %v281
      %v1345 = vpop.permute.xlu0 %1344
      %1347 = vset.pattern.permute.xlu0 2
      %1348 = vperm.xlu0 %1347, %v282
      %v1349 = vpop.permute.xlu0 %1348
      %1351 = vset.pattern.permute.xlu0 2
      %1352 = vperm.xlu0 %1351, %v283
      %v1353 = vpop.permute.xlu0 %1352
      %1355 = vset.pattern.permute.xlu0 2
      %1356 = vperm.xlu0 %1355, %v284
      %v1357 = vpop.permute.xlu0 %1356
      %1359 = vset.pattern.permute.xlu0 2
      %1360 = vperm.xlu0 %1359, %v285
      %v1361 = vpop.permute.xlu0 %1360
      %1363 = vset.pattern.permute.xlu0 2
      %1364 = vperm.xlu0 %1363, %v286
      %v1365 = vpop.permute.xlu0 %1364
      %1367 = vset.pattern.permute.xlu0 2
      %1368 = vperm.xlu0 %1367, %v287
      %v1369 = vpop.permute.xlu0 %1368
      %1371 = vset.pattern.permute.xlu0 2
      %1372 = vperm.xlu0 %1371, %v288
      %v1373 = vpop.permute.xlu0 %1372
      %1375 = vset.pattern.permute.xlu0 2
      %1376 = vperm.xlu0 %1375, %v289
      %v1377 = vpop.permute.xlu0 %1376
      %1379 = vset.pattern.permute.xlu0 2
      %1380 = vperm.xlu0 %1379, %v290
      %v1381 = vpop.permute.xlu0 %1380
      %1383 = vset.pattern.permute.xlu0 2
      %1384 = vperm.xlu0 %1383, %v291
      %v1385 = vpop.permute.xlu0 %1384
      %v1387 = vperm.slane %v292, 2
      %v1388 = vmul.f32 %v1133, %v1387
      %v1389 = vmul.f32 %v1137, %v1387
      %v1390 = vmul.f32 %v1141, %v1387
      %v1391 = vmul.f32 %v1145, %v1387
      %v1392 = vmul.f32 %v1149, %v1387
      %v1393 = vmul.f32 %v1153, %v1387
      %v1394 = vmul.f32 %v1157, %v1387
      %v1395 = vmul.f32 %v1161, %v1387
      %v1396 = vmul.f32 %v1165, %v1387
      %v1397 = vmul.f32 %v1169, %v1387
      %v1398 = vmul.f32 %v1173, %v1387
      %v1399 = vmul.f32 %v1177, %v1387
      %v1400 = vmul.f32 %v1181, %v1387
      %v1401 = vmul.f32 %v1185, %v1387
      %v1402 = vmul.f32 %v1189, %v1387
      %v1403 = vmul.f32 %v1193, %v1387
      %v1404 = vmul.f32 %v1197, %v1387
      %v1405 = vmul.f32 %v1201, %v1387
      %v1406 = vmul.f32 %v1205, %v1387
      %v1407 = vmul.f32 %v1209, %v1387
      %v1408 = vmul.f32 %v1213, %v1387
      %v1409 = vmul.f32 %v1217, %v1387
      %v1410 = vmul.f32 %v1221, %v1387
      %v1411 = vmul.f32 %v1225, %v1387
      %v1412 = vmul.f32 %v1229, %v1387
      %v1413 = vmul.f32 %v1233, %v1387
      %v1414 = vmul.f32 %v1237, %v1387
      %v1415 = vmul.f32 %v1241, %v1387
      %v1416 = vmul.f32 %v1245, %v1387
      %v1417 = vmul.f32 %v1249, %v1387
      %v1418 = vmul.f32 %v1253, %v1387
      %v1419 = vmul.f32 %v1257, %v1387
      %v1420 = vmul.f32 %v1261, %v1387
      %v1421 = vmul.f32 %v1265, %v1387
      %v1422 = vmul.f32 %v1269, %v1387
      %v1423 = vmul.f32 %v1273, %v1387
      %v1424 = vmul.f32 %v1277, %v1387
      %v1425 = vmul.f32 %v1281, %v1387
      %v1426 = vmul.f32 %v1285, %v1387
      %v1427 = vmul.f32 %v1289, %v1387
      %v1428 = vmul.f32 %v1293, %v1387
      %v1429 = vmul.f32 %v1297, %v1387
      %v1430 = vmul.f32 %v1301, %v1387
      %v1431 = vmul.f32 %v1305, %v1387
      %v1432 = vmul.f32 %v1309, %v1387
      %v1433 = vmul.f32 %v1313, %v1387
      %v1434 = vmul.f32 %v1317, %v1387
      %v1435 = vmul.f32 %v1321, %v1387
      %v1436 = vmul.f32 %v1325, %v1387
      %v1437 = vmul.f32 %v1329, %v1387
      %v1438 = vmul.f32 %v1333, %v1387
      %v1439 = vmul.f32 %v1337, %v1387
      %v1440 = vmul.f32 %v1341, %v1387
      %v1441 = vmul.f32 %v1345, %v1387
      %v1442 = vmul.f32 %v1349, %v1387
      %v1443 = vmul.f32 %v1353, %v1387
      %v1444 = vmul.f32 %v1357, %v1387
      %v1445 = vmul.f32 %v1361, %v1387
      %v1446 = vmul.f32 %v1365, %v1387
      %v1447 = vmul.f32 %v1369, %v1387
      %v1448 = vmul.f32 %v1373, %v1387
      %v1449 = vmul.f32 %v1377, %v1387
      %v1450 = vmul.f32 %v1381, %v1387
      %v1451 = vmul.f32 %v1385, %v1387
      %v1452 = vadd.f32 %v1067, %v1388
      %v1453 = vadd.f32 %v1068, %v1389
      %v1454 = vadd.f32 %v1069, %v1390
      %v1455 = vadd.f32 %v1070, %v1391
      %v1456 = vadd.f32 %v1071, %v1392
      %v1457 = vadd.f32 %v1072, %v1393
      %v1458 = vadd.f32 %v1073, %v1394
      %v1459 = vadd.f32 %v1074, %v1395
      %v1460 = vadd.f32 %v1075, %v1396
      %v1461 = vadd.f32 %v1076, %v1397
      %v1462 = vadd.f32 %v1077, %v1398
      %v1463 = vadd.f32 %v1078, %v1399
      %v1464 = vadd.f32 %v1079, %v1400
      %v1465 = vadd.f32 %v1080, %v1401
      %v1466 = vadd.f32 %v1081, %v1402
      %v1467 = vadd.f32 %v1082, %v1403
      %v1468 = vadd.f32 %v1083, %v1404
      %v1469 = vadd.f32 %v1084, %v1405
      %v1470 = vadd.f32 %v1085, %v1406
      %v1471 = vadd.f32 %v1086, %v1407
      %v1472 = vadd.f32 %v1087, %v1408
      %v1473 = vadd.f32 %v1088, %v1409
      %v1474 = vadd.f32 %v1089, %v1410
      %v1475 = vadd.f32 %v1090, %v1411
      %v1476 = vadd.f32 %v1091, %v1412
      %v1477 = vadd.f32 %v1092, %v1413
      %v1478 = vadd.f32 %v1093, %v1414
      %v1479 = vadd.f32 %v1094, %v1415
      %v1480 = vadd.f32 %v1095, %v1416
      %v1481 = vadd.f32 %v1096, %v1417
      %v1482 = vadd.f32 %v1097, %v1418
      %v1483 = vadd.f32 %v1098, %v1419
      %v1484 = vadd.f32 %v1099, %v1420
      %v1485 = vadd.f32 %v1100, %v1421
      %v1486 = vadd.f32 %v1101, %v1422
      %v1487 = vadd.f32 %v1102, %v1423
      %v1488 = vadd.f32 %v1103, %v1424
      %v1489 = vadd.f32 %v1104, %v1425
      %v1490 = vadd.f32 %v1105, %v1426
      %v1491 = vadd.f32 %v1106, %v1427
      %v1492 = vadd.f32 %v1107, %v1428
      %v1493 = vadd.f32 %v1108, %v1429
      %v1494 = vadd.f32 %v1109, %v1430
      %v1495 = vadd.f32 %v1110, %v1431
      %v1496 = vadd.f32 %v1111, %v1432
      %v1497 = vadd.f32 %v1112, %v1433
      %v1498 = vadd.f32 %v1113, %v1434
      %v1499 = vadd.f32 %v1114, %v1435
      %v1500 = vadd.f32 %v1115, %v1436
      %v1501 = vadd.f32 %v1116, %v1437
      %v1502 = vadd.f32 %v1117, %v1438
      %v1503 = vadd.f32 %v1118, %v1439
      %v1504 = vadd.f32 %v1119, %v1440
      %v1505 = vadd.f32 %v1120, %v1441
      %v1506 = vadd.f32 %v1121, %v1442
      %v1507 = vadd.f32 %v1122, %v1443
      %v1508 = vadd.f32 %v1123, %v1444
      %v1509 = vadd.f32 %v1124, %v1445
      %v1510 = vadd.f32 %v1125, %v1446
      %v1511 = vadd.f32 %v1126, %v1447
      %v1512 = vadd.f32 %v1127, %v1448
      %v1513 = vadd.f32 %v1128, %v1449
      %v1514 = vadd.f32 %v1129, %v1450
      %v1515 = vadd.f32 %v1130, %v1451
      %1516 = vset.pattern.permute.xlu0 3
      %1517 = vperm.xlu0 %1516, %v228
      %v1518 = vpop.permute.xlu0 %1517
      %1520 = vset.pattern.permute.xlu0 3
      %1521 = vperm.xlu0 %1520, %v229
      %v1522 = vpop.permute.xlu0 %1521
      %1524 = vset.pattern.permute.xlu0 3
      %1525 = vperm.xlu0 %1524, %v230
      %v1526 = vpop.permute.xlu0 %1525
      %1528 = vset.pattern.permute.xlu0 3
      %1529 = vperm.xlu0 %1528, %v231
      %v1530 = vpop.permute.xlu0 %1529
      %1532 = vset.pattern.permute.xlu0 3
      %1533 = vperm.xlu0 %1532, %v232
      %v1534 = vpop.permute.xlu0 %1533
      %1536 = vset.pattern.permute.xlu0 3
      %1537 = vperm.xlu0 %1536, %v233
      %v1538 = vpop.permute.xlu0 %1537
      %1540 = vset.pattern.permute.xlu0 3
      %1541 = vperm.xlu0 %1540, %v234
      %v1542 = vpop.permute.xlu0 %1541
      %1544 = vset.pattern.permute.xlu0 3
      %1545 = vperm.xlu0 %1544, %v235
      %v1546 = vpop.permute.xlu0 %1545
      %1548 = vset.pattern.permute.xlu0 3
      %1549 = vperm.xlu0 %1548, %v236
      %v1550 = vpop.permute.xlu0 %1549
      %1552 = vset.pattern.permute.xlu0 3
      %1553 = vperm.xlu0 %1552, %v237
      %v1554 = vpop.permute.xlu0 %1553
      %1556 = vset.pattern.permute.xlu0 3
      %1557 = vperm.xlu0 %1556, %v238
      %v1558 = vpop.permute.xlu0 %1557
      %1560 = vset.pattern.permute.xlu0 3
      %1561 = vperm.xlu0 %1560, %v239
      %v1562 = vpop.permute.xlu0 %1561
      %1564 = vset.pattern.permute.xlu0 3
      %1565 = vperm.xlu0 %1564, %v240
      %v1566 = vpop.permute.xlu0 %1565
      %1568 = vset.pattern.permute.xlu0 3
      %1569 = vperm.xlu0 %1568, %v241
      %v1570 = vpop.permute.xlu0 %1569
      %1572 = vset.pattern.permute.xlu0 3
      %1573 = vperm.xlu0 %1572, %v242
      %v1574 = vpop.permute.xlu0 %1573
      %1576 = vset.pattern.permute.xlu0 3
      %1577 = vperm.xlu0 %1576, %v243
      %v1578 = vpop.permute.xlu0 %1577
      %1580 = vset.pattern.permute.xlu0 3
      %1581 = vperm.xlu0 %1580, %v244
      %v1582 = vpop.permute.xlu0 %1581
      %1584 = vset.pattern.permute.xlu0 3
      %1585 = vperm.xlu0 %1584, %v245
      %v1586 = vpop.permute.xlu0 %1585
      %1588 = vset.pattern.permute.xlu0 3
      %1589 = vperm.xlu0 %1588, %v246
      %v1590 = vpop.permute.xlu0 %1589
      %1592 = vset.pattern.permute.xlu0 3
      %1593 = vperm.xlu0 %1592, %v247
      %v1594 = vpop.permute.xlu0 %1593
      %1596 = vset.pattern.permute.xlu0 3
      %1597 = vperm.xlu0 %1596, %v248
      %v1598 = vpop.permute.xlu0 %1597
      %1600 = vset.pattern.permute.xlu0 3
      %1601 = vperm.xlu0 %1600, %v249
      %v1602 = vpop.permute.xlu0 %1601
      %1604 = vset.pattern.permute.xlu0 3
      %1605 = vperm.xlu0 %1604, %v250
      %v1606 = vpop.permute.xlu0 %1605
      %1608 = vset.pattern.permute.xlu0 3
      %1609 = vperm.xlu0 %1608, %v251
      %v1610 = vpop.permute.xlu0 %1609
      %1612 = vset.pattern.permute.xlu0 3
      %1613 = vperm.xlu0 %1612, %v252
      %v1614 = vpop.permute.xlu0 %1613
      %1616 = vset.pattern.permute.xlu0 3
      %1617 = vperm.xlu0 %1616, %v253
      %v1618 = vpop.permute.xlu0 %1617
      %1620 = vset.pattern.permute.xlu0 3
      %1621 = vperm.xlu0 %1620, %v254
      %v1622 = vpop.permute.xlu0 %1621
      %1624 = vset.pattern.permute.xlu0 3
      %1625 = vperm.xlu0 %1624, %v255
      %v1626 = vpop.permute.xlu0 %1625
      %1628 = vset.pattern.permute.xlu0 3
      %1629 = vperm.xlu0 %1628, %v256
      %v1630 = vpop.permute.xlu0 %1629
      %1632 = vset.pattern.permute.xlu0 3
      %1633 = vperm.xlu0 %1632, %v257
      %v1634 = vpop.permute.xlu0 %1633
      %1636 = vset.pattern.permute.xlu0 3
      %1637 = vperm.xlu0 %1636, %v258
      %v1638 = vpop.permute.xlu0 %1637
      %1640 = vset.pattern.permute.xlu0 3
      %1641 = vperm.xlu0 %1640, %v259
      %v1642 = vpop.permute.xlu0 %1641
      %1644 = vset.pattern.permute.xlu0 3
      %1645 = vperm.xlu0 %1644, %v260
      %v1646 = vpop.permute.xlu0 %1645
      %1648 = vset.pattern.permute.xlu0 3
      %1649 = vperm.xlu0 %1648, %v261
      %v1650 = vpop.permute.xlu0 %1649
      %1652 = vset.pattern.permute.xlu0 3
      %1653 = vperm.xlu0 %1652, %v262
      %v1654 = vpop.permute.xlu0 %1653
      %1656 = vset.pattern.permute.xlu0 3
      %1657 = vperm.xlu0 %1656, %v263
      %v1658 = vpop.permute.xlu0 %1657
      %1660 = vset.pattern.permute.xlu0 3
      %1661 = vperm.xlu0 %1660, %v264
      %v1662 = vpop.permute.xlu0 %1661
      %1664 = vset.pattern.permute.xlu0 3
      %1665 = vperm.xlu0 %1664, %v265
      %v1666 = vpop.permute.xlu0 %1665
      %1668 = vset.pattern.permute.xlu0 3
      %1669 = vperm.xlu0 %1668, %v266
      %v1670 = vpop.permute.xlu0 %1669
      %1672 = vset.pattern.permute.xlu0 3
      %1673 = vperm.xlu0 %1672, %v267
      %v1674 = vpop.permute.xlu0 %1673
      %1676 = vset.pattern.permute.xlu0 3
      %1677 = vperm.xlu0 %1676, %v268
      %v1678 = vpop.permute.xlu0 %1677
      %1680 = vset.pattern.permute.xlu0 3
      %1681 = vperm.xlu0 %1680, %v269
      %v1682 = vpop.permute.xlu0 %1681
      %1684 = vset.pattern.permute.xlu0 3
      %1685 = vperm.xlu0 %1684, %v270
      %v1686 = vpop.permute.xlu0 %1685
      %1688 = vset.pattern.permute.xlu0 3
      %1689 = vperm.xlu0 %1688, %v271
      %v1690 = vpop.permute.xlu0 %1689
      %1692 = vset.pattern.permute.xlu0 3
      %1693 = vperm.xlu0 %1692, %v272
      %v1694 = vpop.permute.xlu0 %1693
      %1696 = vset.pattern.permute.xlu0 3
      %1697 = vperm.xlu0 %1696, %v273
      %v1698 = vpop.permute.xlu0 %1697
      %1700 = vset.pattern.permute.xlu0 3
      %1701 = vperm.xlu0 %1700, %v274
      %v1702 = vpop.permute.xlu0 %1701
      %1704 = vset.pattern.permute.xlu0 3
      %1705 = vperm.xlu0 %1704, %v275
      %v1706 = vpop.permute.xlu0 %1705
      %1708 = vset.pattern.permute.xlu0 3
      %1709 = vperm.xlu0 %1708, %v276
      %v1710 = vpop.permute.xlu0 %1709
      %1712 = vset.pattern.permute.xlu0 3
      %1713 = vperm.xlu0 %1712, %v277
      %v1714 = vpop.permute.xlu0 %1713
      %1716 = vset.pattern.permute.xlu0 3
      %1717 = vperm.xlu0 %1716, %v278
      %v1718 = vpop.permute.xlu0 %1717
      %1720 = vset.pattern.permute.xlu0 3
      %1721 = vperm.xlu0 %1720, %v279
      %v1722 = vpop.permute.xlu0 %1721
      %1724 = vset.pattern.permute.xlu0 3
      %1725 = vperm.xlu0 %1724, %v280
      %v1726 = vpop.permute.xlu0 %1725
      %1728 = vset.pattern.permute.xlu0 3
      %1729 = vperm.xlu0 %1728, %v281
      %v1730 = vpop.permute.xlu0 %1729
      %1732 = vset.pattern.permute.xlu0 3
      %1733 = vperm.xlu0 %1732, %v282
      %v1734 = vpop.permute.xlu0 %1733
      %1736 = vset.pattern.permute.xlu0 3
      %1737 = vperm.xlu0 %1736, %v283
      %v1738 = vpop.permute.xlu0 %1737
      %1740 = vset.pattern.permute.xlu0 3
      %1741 = vperm.xlu0 %1740, %v284
      %v1742 = vpop.permute.xlu0 %1741
      %1744 = vset.pattern.permute.xlu0 3
      %1745 = vperm.xlu0 %1744, %v285
      %v1746 = vpop.permute.xlu0 %1745
      %1748 = vset.pattern.permute.xlu0 3
      %1749 = vperm.xlu0 %1748, %v286
      %v1750 = vpop.permute.xlu0 %1749
      %1752 = vset.pattern.permute.xlu0 3
      %1753 = vperm.xlu0 %1752, %v287
      %v1754 = vpop.permute.xlu0 %1753
      %1756 = vset.pattern.permute.xlu0 3
      %1757 = vperm.xlu0 %1756, %v288
      %v1758 = vpop.permute.xlu0 %1757
      %1760 = vset.pattern.permute.xlu0 3
      %1761 = vperm.xlu0 %1760, %v289
      %v1762 = vpop.permute.xlu0 %1761
      %1764 = vset.pattern.permute.xlu0 3
      %1765 = vperm.xlu0 %1764, %v290
      %v1766 = vpop.permute.xlu0 %1765
      %1768 = vset.pattern.permute.xlu0 3
      %1769 = vperm.xlu0 %1768, %v291
      %v1770 = vpop.permute.xlu0 %1769
      %v1772 = vperm.slane %v292, 3
      %v1773 = vmul.f32 %v1518, %v1772
      %v1774 = vmul.f32 %v1522, %v1772
      %v1775 = vmul.f32 %v1526, %v1772
      %v1776 = vmul.f32 %v1530, %v1772
      %v1777 = vmul.f32 %v1534, %v1772
      %v1778 = vmul.f32 %v1538, %v1772
      %v1779 = vmul.f32 %v1542, %v1772
      %v1780 = vmul.f32 %v1546, %v1772
      %v1781 = vmul.f32 %v1550, %v1772
      %v1782 = vmul.f32 %v1554, %v1772
      %v1783 = vmul.f32 %v1558, %v1772
      %v1784 = vmul.f32 %v1562, %v1772
      %v1785 = vmul.f32 %v1566, %v1772
      %v1786 = vmul.f32 %v1570, %v1772
      %v1787 = vmul.f32 %v1574, %v1772
      %v1788 = vmul.f32 %v1578, %v1772
      %v1789 = vmul.f32 %v1582, %v1772
      %v1790 = vmul.f32 %v1586, %v1772
      %v1791 = vmul.f32 %v1590, %v1772
      %v1792 = vmul.f32 %v1594, %v1772
      %v1793 = vmul.f32 %v1598, %v1772
      %v1794 = vmul.f32 %v1602, %v1772
      %v1795 = vmul.f32 %v1606, %v1772
      %v1796 = vmul.f32 %v1610, %v1772
      %v1797 = vmul.f32 %v1614, %v1772
      %v1798 = vmul.f32 %v1618, %v1772
      %v1799 = vmul.f32 %v1622, %v1772
      %v1800 = vmul.f32 %v1626, %v1772
      %v1801 = vmul.f32 %v1630, %v1772
      %v1802 = vmul.f32 %v1634, %v1772
      %v1803 = vmul.f32 %v1638, %v1772
      %v1804 = vmul.f32 %v1642, %v1772
      %v1805 = vmul.f32 %v1646, %v1772
      %v1806 = vmul.f32 %v1650, %v1772
      %v1807 = vmul.f32 %v1654, %v1772
      %v1808 = vmul.f32 %v1658, %v1772
      %v1809 = vmul.f32 %v1662, %v1772
      %v1810 = vmul.f32 %v1666, %v1772
      %v1811 = vmul.f32 %v1670, %v1772
      %v1812 = vmul.f32 %v1674, %v1772
      %v1813 = vmul.f32 %v1678, %v1772
      %v1814 = vmul.f32 %v1682, %v1772
      %v1815 = vmul.f32 %v1686, %v1772
      %v1816 = vmul.f32 %v1690, %v1772
      %v1817 = vmul.f32 %v1694, %v1772
      %v1818 = vmul.f32 %v1698, %v1772
      %v1819 = vmul.f32 %v1702, %v1772
      %v1820 = vmul.f32 %v1706, %v1772
      %v1821 = vmul.f32 %v1710, %v1772
      %v1822 = vmul.f32 %v1714, %v1772
      %v1823 = vmul.f32 %v1718, %v1772
      %v1824 = vmul.f32 %v1722, %v1772
      %v1825 = vmul.f32 %v1726, %v1772
      %v1826 = vmul.f32 %v1730, %v1772
      %v1827 = vmul.f32 %v1734, %v1772
      %v1828 = vmul.f32 %v1738, %v1772
      %v1829 = vmul.f32 %v1742, %v1772
      %v1830 = vmul.f32 %v1746, %v1772
      %v1831 = vmul.f32 %v1750, %v1772
      %v1832 = vmul.f32 %v1754, %v1772
      %v1833 = vmul.f32 %v1758, %v1772
      %v1834 = vmul.f32 %v1762, %v1772
      %v1835 = vmul.f32 %v1766, %v1772
      %v1836 = vmul.f32 %v1770, %v1772
      %v1837 = vadd.f32 %v1452, %v1773
      %v1838 = vadd.f32 %v1453, %v1774
      %v1839 = vadd.f32 %v1454, %v1775
      %v1840 = vadd.f32 %v1455, %v1776
      %v1841 = vadd.f32 %v1456, %v1777
      %v1842 = vadd.f32 %v1457, %v1778
      %v1843 = vadd.f32 %v1458, %v1779
      %v1844 = vadd.f32 %v1459, %v1780
      %v1845 = vadd.f32 %v1460, %v1781
      %v1846 = vadd.f32 %v1461, %v1782
      %v1847 = vadd.f32 %v1462, %v1783
      %v1848 = vadd.f32 %v1463, %v1784
      %v1849 = vadd.f32 %v1464, %v1785
      %v1850 = vadd.f32 %v1465, %v1786
      %v1851 = vadd.f32 %v1466, %v1787
      %v1852 = vadd.f32 %v1467, %v1788
      %v1853 = vadd.f32 %v1468, %v1789
      %v1854 = vadd.f32 %v1469, %v1790
      %v1855 = vadd.f32 %v1470, %v1791
      %v1856 = vadd.f32 %v1471, %v1792
      %v1857 = vadd.f32 %v1472, %v1793
      %v1858 = vadd.f32 %v1473, %v1794
      %v1859 = vadd.f32 %v1474, %v1795
      %v1860 = vadd.f32 %v1475, %v1796
      %v1861 = vadd.f32 %v1476, %v1797
      %v1862 = vadd.f32 %v1477, %v1798
      %v1863 = vadd.f32 %v1478, %v1799
      %v1864 = vadd.f32 %v1479, %v1800
      %v1865 = vadd.f32 %v1480, %v1801
      %v1866 = vadd.f32 %v1481, %v1802
      %v1867 = vadd.f32 %v1482, %v1803
      %v1868 = vadd.f32 %v1483, %v1804
      %v1869 = vadd.f32 %v1484, %v1805
      %v1870 = vadd.f32 %v1485, %v1806
      %v1871 = vadd.f32 %v1486, %v1807
      %v1872 = vadd.f32 %v1487, %v1808
      %v1873 = vadd.f32 %v1488, %v1809
      %v1874 = vadd.f32 %v1489, %v1810
      %v1875 = vadd.f32 %v1490, %v1811
      %v1876 = vadd.f32 %v1491, %v1812
      %v1877 = vadd.f32 %v1492, %v1813
      %v1878 = vadd.f32 %v1493, %v1814
      %v1879 = vadd.f32 %v1494, %v1815
      %v1880 = vadd.f32 %v1495, %v1816
      %v1881 = vadd.f32 %v1496, %v1817
      %v1882 = vadd.f32 %v1497, %v1818
      %v1883 = vadd.f32 %v1498, %v1819
      %v1884 = vadd.f32 %v1499, %v1820
      %v1885 = vadd.f32 %v1500, %v1821
      %v1886 = vadd.f32 %v1501, %v1822
      %v1887 = vadd.f32 %v1502, %v1823
      %v1888 = vadd.f32 %v1503, %v1824
      %v1889 = vadd.f32 %v1504, %v1825
      %v1890 = vadd.f32 %v1505, %v1826
      %v1891 = vadd.f32 %v1506, %v1827
      %v1892 = vadd.f32 %v1507, %v1828
      %v1893 = vadd.f32 %v1508, %v1829
      %v1894 = vadd.f32 %v1509, %v1830
      %v1895 = vadd.f32 %v1510, %v1831
      %v1896 = vadd.f32 %v1511, %v1832
      %v1897 = vadd.f32 %v1512, %v1833
      %v1898 = vadd.f32 %v1513, %v1834
      %v1899 = vadd.f32 %v1514, %v1835
      %v1900 = vadd.f32 %v1515, %v1836
      %v1901 = vmax.f32 %v1837, 0.0
      %v1902 = vmax.f32 %v1838, 0.0
      %v1903 = vmax.f32 %v1839, 0.0
      %v1904 = vmax.f32 %v1840, 0.0
      %v1905 = vmax.f32 %v1841, 0.0
      %v1906 = vmax.f32 %v1842, 0.0
      %v1907 = vmax.f32 %v1843, 0.0
      %v1908 = vmax.f32 %v1844, 0.0
      %v1909 = vmax.f32 %v1845, 0.0
      %v1910 = vmax.f32 %v1846, 0.0
      %v1911 = vmax.f32 %v1847, 0.0
      %v1912 = vmax.f32 %v1848, 0.0
      %v1913 = vmax.f32 %v1849, 0.0
      %v1914 = vmax.f32 %v1850, 0.0
      %v1915 = vmax.f32 %v1851, 0.0
      %v1916 = vmax.f32 %v1852, 0.0
      %v1917 = vmax.f32 %v1853, 0.0
      %v1918 = vmax.f32 %v1854, 0.0
      %v1919 = vmax.f32 %v1855, 0.0
      %v1920 = vmax.f32 %v1856, 0.0
      %v1921 = vmax.f32 %v1857, 0.0
      %v1922 = vmax.f32 %v1858, 0.0
      %v1923 = vmax.f32 %v1859, 0.0
      %v1924 = vmax.f32 %v1860, 0.0
      %v1925 = vmax.f32 %v1861, 0.0
      %v1926 = vmax.f32 %v1862, 0.0
      %v1927 = vmax.f32 %v1863, 0.0
      %v1928 = vmax.f32 %v1864, 0.0
      %v1929 = vmax.f32 %v1865, 0.0
      %v1930 = vmax.f32 %v1866, 0.0
      %v1931 = vmax.f32 %v1867, 0.0
      %v1932 = vmax.f32 %v1868, 0.0
      %v1933 = vmax.f32 %v1869, 0.0
      %v1934 = vmax.f32 %v1870, 0.0
      %v1935 = vmax.f32 %v1871, 0.0
      %v1936 = vmax.f32 %v1872, 0.0
      %v1937 = vmax.f32 %v1873, 0.0
      %v1938 = vmax.f32 %v1874, 0.0
      %v1939 = vmax.f32 %v1875, 0.0
      %v1940 = vmax.f32 %v1876, 0.0
      %v1941 = vmax.f32 %v1877, 0.0
      %v1942 = vmax.f32 %v1878, 0.0
      %v1943 = vmax.f32 %v1879, 0.0
      %v1944 = vmax.f32 %v1880, 0.0
      %v1945 = vmax.f32 %v1881, 0.0
      %v1946 = vmax.f32 %v1882, 0.0
      %v1947 = vmax.f32 %v1883, 0.0
      %v1948 = vmax.f32 %v1884, 0.0
      %v1949 = vmax.f32 %v1885, 0.0
      %v1950 = vmax.f32 %v1886, 0.0
      %v1951 = vmax.f32 %v1887, 0.0
      %v1952 = vmax.f32 %v1888, 0.0
      %v1953 = vmax.f32 %v1889, 0.0
      %v1954 = vmax.f32 %v1890, 0.0
      %v1955 = vmax.f32 %v1891, 0.0
      %v1956 = vmax.f32 %v1892, 0.0
      %v1957 = vmax.f32 %v1893, 0.0
      %v1958 = vmax.f32 %v1894, 0.0
      %v1959 = vmax.f32 %v1895, 0.0
      %v1960 = vmax.f32 %v1896, 0.0
      %v1961 = vmax.f32 %v1897, 0.0
      %v1962 = vmax.f32 %v1898, 0.0
      %v1963 = vmax.f32 %v1899, 0.0
      %v1964 = vmax.f32 %v1900, 0.0
      %v1965 = vpack.c.bf16 %v1902, %v1901
      %v1966 = vpack.c.bf16 %v1904, %v1903
      %v1967 = vpack.c.bf16 %v1906, %v1905
      %v1968 = vpack.c.bf16 %v1908, %v1907
      %v1969 = vpack.c.bf16 %v1910, %v1909
      %v1970 = vpack.c.bf16 %v1912, %v1911
      %v1971 = vpack.c.bf16 %v1914, %v1913
      %v1972 = vpack.c.bf16 %v1916, %v1915
      %v1973 = vpack.c.bf16 %v1918, %v1917
      %v1974 = vpack.c.bf16 %v1920, %v1919
      %v1975 = vpack.c.bf16 %v1922, %v1921
      %v1976 = vpack.c.bf16 %v1924, %v1923
      %v1977 = vpack.c.bf16 %v1926, %v1925
      %v1978 = vpack.c.bf16 %v1928, %v1927
      %v1979 = vpack.c.bf16 %v1930, %v1929
      %v1980 = vpack.c.bf16 %v1932, %v1931
      %v1981 = vpack.c.bf16 %v1934, %v1933
      %v1982 = vpack.c.bf16 %v1936, %v1935
      %v1983 = vpack.c.bf16 %v1938, %v1937
      %v1984 = vpack.c.bf16 %v1940, %v1939
      %v1985 = vpack.c.bf16 %v1942, %v1941
      %v1986 = vpack.c.bf16 %v1944, %v1943
      %v1987 = vpack.c.bf16 %v1946, %v1945
      %v1988 = vpack.c.bf16 %v1948, %v1947
      %v1989 = vpack.c.bf16 %v1950, %v1949
      %v1990 = vpack.c.bf16 %v1952, %v1951
      %v1991 = vpack.c.bf16 %v1954, %v1953
      %v1992 = vpack.c.bf16 %v1956, %v1955
      %v1993 = vpack.c.bf16 %v1958, %v1957
      %v1994 = vpack.c.bf16 %v1960, %v1959
      %v1995 = vpack.c.bf16 %v1962, %v1961
      %v1996 = vpack.c.bf16 %v1964, %v1963
      %v1997 = vld [vmem:[%s3] sm:$0xf]
      %v1998 = vld [vmem:[%s3 + $0x4] sm:$0xf]
      %v1999 = vld [vmem:[%s3 + $0x8] sm:$0xf]
      %v2000 = vld [vmem:[%s3 + $0xc] sm:$0xf]
      %v2001 = vld [vmem:[%s3 + $0x10] sm:$0xf]
      %v2002 = vld [vmem:[%s3 + $0x14] sm:$0xf]
      %v2003 = vld [vmem:[%s3 + $0x18] sm:$0xf]
      %v2004 = vld [vmem:[%s3 + $0x1c] sm:$0xf]
      %v2005 = vld [vmem:[%s3 + $0x20] sm:$0xf]
      %v2006 = vld [vmem:[%s3 + $0x24] sm:$0xf]
      %v2007 = vld [vmem:[%s3 + $0x28] sm:$0xf]
      %v2008 = vld [vmem:[%s3 + $0x2c] sm:$0xf]
      %v2009 = vld [vmem:[%s3 + $0x30] sm:$0xf]
      %v2010 = vld [vmem:[%s3 + $0x34] sm:$0xf]
      %v2011 = vld [vmem:[%s3 + $0x38] sm:$0xf]
      %v2012 = vld [vmem:[%s3 + $0x3c] sm:$0xf]
      %v2029 = vunpack.c.l.b16 %v1997
      %v2030 = vunpack.c.l.b16 %v1998
      %v2031 = vunpack.c.l.b16 %v1999
      %v2032 = vunpack.c.l.b16 %v2000
      %v2033 = vunpack.c.l.b16 %v2001
      %v2034 = vunpack.c.l.b16 %v2002
      %v2035 = vunpack.c.l.b16 %v2003
      %v2036 = vunpack.c.l.b16 %v2004
      %v2037 = vunpack.c.l.b16 %v2005
      %v2038 = vunpack.c.l.b16 %v2006
      %v2039 = vunpack.c.l.b16 %v2007
      %v2040 = vunpack.c.l.b16 %v2008
      %v2041 = vunpack.c.l.b16 %v2009
      %v2042 = vunpack.c.l.b16 %v2010
      %v2043 = vunpack.c.l.b16 %v2011
      %v2044 = vunpack.c.l.b16 %v2012
      %v2045 = vpack.c.b16 %v2030, %v2029
      %v2046 = vpack.c.b16 %v2032, %v2031
      %v2047 = vpack.c.b16 %v2034, %v2033
      %v2048 = vpack.c.b16 %v2036, %v2035
      %v2049 = vpack.c.b16 %v2038, %v2037
      %v2050 = vpack.c.b16 %v2040, %v2039
      %v2051 = vpack.c.b16 %v2042, %v2041
      %v2052 = vpack.c.b16 %v2044, %v2043
      %2061 = vmatpush.bf16.msra.mxu0 %v2052
      %2062 = vmatpush.bf16.msra.mxu0 %v2051
      %2063 = vmatpush.bf16.msra.mxu0 %v2050
      %2064 = vmatpush.bf16.msra.mxu0 %v2049
      %2065 = vmatpush.bf16.msra.mxu0 %v2048
      %2066 = vmatpush.bf16.msra.mxu0 %v2047
      %2067 = vmatpush.bf16.msra.mxu0 %v2046
      %2068 = vmatpush.bf16.msra.mxu0 %v2045
      %2069 = vmatmul.bf16.gmra.mxu0 %v1965
      %v2070 = vpop.f32.mrf.mxu0
      %v2071 = vadd.f32 0.0, %v2070
      %v2072 = vpop.f32.mrf.mxu0
      %v2073 = vadd.f32 0.0, %v2072
      %2074 = vmatmul.bf16.gmra.mxu0 %v1966
      %v2075 = vpop.f32.mrf.mxu0
      %v2076 = vadd.f32 0.0, %v2075
      %v2077 = vpop.f32.mrf.mxu0
      %v2078 = vadd.f32 0.0, %v2077
      %2079 = vmatmul.bf16.gmra.mxu0 %v1967
      %v2080 = vpop.f32.mrf.mxu0
      %v2081 = vadd.f32 0.0, %v2080
      %v2082 = vpop.f32.mrf.mxu0
      %v2083 = vadd.f32 0.0, %v2082
      %2084 = vmatmul.bf16.gmra.mxu0 %v1968
      %v2085 = vpop.f32.mrf.mxu0
      %v2086 = vadd.f32 0.0, %v2085
      %v2087 = vpop.f32.mrf.mxu0
      %v2088 = vadd.f32 0.0, %v2087
      %2089 = vmatmul.bf16.gmra.mxu0 %v1969
      %v2090 = vpop.f32.mrf.mxu0
      %v2091 = vadd.f32 0.0, %v2090
      %v2092 = vpop.f32.mrf.mxu0
      %v2093 = vadd.f32 0.0, %v2092
      %2094 = vmatmul.bf16.gmra.mxu0 %v1970
      %v2095 = vpop.f32.mrf.mxu0
      %v2096 = vadd.f32 0.0, %v2095
      %v2097 = vpop.f32.mrf.mxu0
      %v2098 = vadd.f32 0.0, %v2097
      %2099 = vmatmul.bf16.gmra.mxu0 %v1971
      %v2100 = vpop.f32.mrf.mxu0
      %v2101 = vadd.f32 0.0, %v2100
      %v2102 = vpop.f32.mrf.mxu0
      %v2103 = vadd.f32 0.0, %v2102
      %2104 = vmatmul.bf16.gmra.mxu0 %v1972
      %v2105 = vpop.f32.mrf.mxu0
      %v2106 = vadd.f32 0.0, %v2105
      %v2107 = vpop.f32.mrf.mxu0
      %v2108 = vadd.f32 0.0, %v2107
      %2109 = vmatmul.bf16.gmra.mxu0 %v1973
      %v2110 = vpop.f32.mrf.mxu0
      %v2111 = vadd.f32 0.0, %v2110
      %v2112 = vpop.f32.mrf.mxu0
      %v2113 = vadd.f32 0.0, %v2112
      %2114 = vmatmul.bf16.gmra.mxu0 %v1974
      %v2115 = vpop.f32.mrf.mxu0
      %v2116 = vadd.f32 0.0, %v2115
      %v2117 = vpop.f32.mrf.mxu0
      %v2118 = vadd.f32 0.0, %v2117
      %2119 = vmatmul.bf16.gmra.mxu0 %v1975
      %v2120 = vpop.f32.mrf.mxu0
      %v2121 = vadd.f32 0.0, %v2120
      %v2122 = vpop.f32.mrf.mxu0
      %v2123 = vadd.f32 0.0, %v2122
      %2124 = vmatmul.bf16.gmra.mxu0 %v1976
      %v2125 = vpop.f32.mrf.mxu0
      %v2126 = vadd.f32 0.0, %v2125
      %v2127 = vpop.f32.mrf.mxu0
      %v2128 = vadd.f32 0.0, %v2127
      %2129 = vmatmul.bf16.gmra.mxu0 %v1977
      %v2130 = vpop.f32.mrf.mxu0
      %v2131 = vadd.f32 0.0, %v2130
      %v2132 = vpop.f32.mrf.mxu0
      %v2133 = vadd.f32 0.0, %v2132
      %2134 = vmatmul.bf16.gmra.mxu0 %v1978
      %v2135 = vpop.f32.mrf.mxu0
      %v2136 = vadd.f32 0.0, %v2135
      %v2137 = vpop.f32.mrf.mxu0
      %v2138 = vadd.f32 0.0, %v2137
      %2139 = vmatmul.bf16.gmra.mxu0 %v1979
      %v2140 = vpop.f32.mrf.mxu0
      %v2141 = vadd.f32 0.0, %v2140
      %v2142 = vpop.f32.mrf.mxu0
      %v2143 = vadd.f32 0.0, %v2142
      %2144 = vmatmul.bf16.gmra.mxu0 %v1980
      %v2145 = vpop.f32.mrf.mxu0
      %v2146 = vadd.f32 0.0, %v2145
      %v2147 = vpop.f32.mrf.mxu0
      %v2148 = vadd.f32 0.0, %v2147
      %2149 = vmatmul.bf16.gmra.mxu0 %v1981
      %v2150 = vpop.f32.mrf.mxu0
      %v2151 = vadd.f32 0.0, %v2150
      %v2152 = vpop.f32.mrf.mxu0
      %v2153 = vadd.f32 0.0, %v2152
      %2154 = vmatmul.bf16.gmra.mxu0 %v1982
      %v2155 = vpop.f32.mrf.mxu0
      %v2156 = vadd.f32 0.0, %v2155
      %v2157 = vpop.f32.mrf.mxu0
      %v2158 = vadd.f32 0.0, %v2157
      %2159 = vmatmul.bf16.gmra.mxu0 %v1983
      %v2160 = vpop.f32.mrf.mxu0
      %v2161 = vadd.f32 0.0, %v2160
      %v2162 = vpop.f32.mrf.mxu0
      %v2163 = vadd.f32 0.0, %v2162
      %2164 = vmatmul.bf16.gmra.mxu0 %v1984
      %v2165 = vpop.f32.mrf.mxu0
      %v2166 = vadd.f32 0.0, %v2165
      %v2167 = vpop.f32.mrf.mxu0
      %v2168 = vadd.f32 0.0, %v2167
      %2169 = vmatmul.bf16.gmra.mxu0 %v1985
      %v2170 = vpop.f32.mrf.mxu0
      %v2171 = vadd.f32 0.0, %v2170
      %v2172 = vpop.f32.mrf.mxu0
      %v2173 = vadd.f32 0.0, %v2172
      %2174 = vmatmul.bf16.gmra.mxu0 %v1986
      %v2175 = vpop.f32.mrf.mxu0
      %v2176 = vadd.f32 0.0, %v2175
      %v2177 = vpop.f32.mrf.mxu0
      %v2178 = vadd.f32 0.0, %v2177
      %2179 = vmatmul.bf16.gmra.mxu0 %v1987
      %v2180 = vpop.f32.mrf.mxu0
      %v2181 = vadd.f32 0.0, %v2180
      %v2182 = vpop.f32.mrf.mxu0
      %v2183 = vadd.f32 0.0, %v2182
      %2184 = vmatmul.bf16.gmra.mxu0 %v1988
      %v2185 = vpop.f32.mrf.mxu0
      %v2186 = vadd.f32 0.0, %v2185
      %v2187 = vpop.f32.mrf.mxu0
      %v2188 = vadd.f32 0.0, %v2187
      %2189 = vmatmul.bf16.gmra.mxu0 %v1989
      %v2190 = vpop.f32.mrf.mxu0
      %v2191 = vadd.f32 0.0, %v2190
      %v2192 = vpop.f32.mrf.mxu0
      %v2193 = vadd.f32 0.0, %v2192
      %2194 = vmatmul.bf16.gmra.mxu0 %v1990
      %v2195 = vpop.f32.mrf.mxu0
      %v2196 = vadd.f32 0.0, %v2195
      %v2197 = vpop.f32.mrf.mxu0
      %v2198 = vadd.f32 0.0, %v2197
      %2199 = vmatmul.bf16.gmra.mxu0 %v1991
      %v2200 = vpop.f32.mrf.mxu0
      %v2201 = vadd.f32 0.0, %v2200
      %v2202 = vpop.f32.mrf.mxu0
      %v2203 = vadd.f32 0.0, %v2202
      %2204 = vmatmul.bf16.gmra.mxu0 %v1992
      %v2205 = vpop.f32.mrf.mxu0
      %v2206 = vadd.f32 0.0, %v2205
      %v2207 = vpop.f32.mrf.mxu0
      %v2208 = vadd.f32 0.0, %v2207
      %2209 = vmatmul.bf16.gmra.mxu0 %v1993
      %v2210 = vpop.f32.mrf.mxu0
      %v2211 = vadd.f32 0.0, %v2210
      %v2212 = vpop.f32.mrf.mxu0
      %v2213 = vadd.f32 0.0, %v2212
      %2214 = vmatmul.bf16.gmra.mxu0 %v1994
      %v2215 = vpop.f32.mrf.mxu0
      %v2216 = vadd.f32 0.0, %v2215
      %v2217 = vpop.f32.mrf.mxu0
      %v2218 = vadd.f32 0.0, %v2217
      %2219 = vmatmul.bf16.gmra.mxu0 %v1995
      %v2220 = vpop.f32.mrf.mxu0
      %v2221 = vadd.f32 0.0, %v2220
      %v2222 = vpop.f32.mrf.mxu0
      %v2223 = vadd.f32 0.0, %v2222
      %2224 = vmatmul.bf16.gmra.mxu0 %v1996
      %v2225 = vpop.f32.mrf.mxu0
      %v2226 = vadd.f32 0.0, %v2225
      %v2227 = vpop.f32.mrf.mxu0
      %v2228 = vadd.f32 0.0, %v2227
      %2229 = vdwg.mxu0
      %v2230 = vld [vmem:[%s4] sm:$0x1]
      %v2232 = vperm.slane %v2230, 0
      %v2234 = vadd.f32 %v2071, %v2232
      %v2235 = vadd.f32 %v2073, %v2232
      %v2236 = vadd.f32 %v2076, %v2232
      %v2237 = vadd.f32 %v2078, %v2232
      %v2238 = vadd.f32 %v2081, %v2232
      %v2239 = vadd.f32 %v2083, %v2232
      %v2240 = vadd.f32 %v2086, %v2232
      %v2241 = vadd.f32 %v2088, %v2232
      %v2242 = vadd.f32 %v2091, %v2232
      %v2243 = vadd.f32 %v2093, %v2232
      %v2244 = vadd.f32 %v2096, %v2232
      %v2245 = vadd.f32 %v2098, %v2232
      %v2246 = vadd.f32 %v2101, %v2232
      %v2247 = vadd.f32 %v2103, %v2232
      %v2248 = vadd.f32 %v2106, %v2232
      %v2249 = vadd.f32 %v2108, %v2232
      %v2250 = vadd.f32 %v2111, %v2232
      %v2251 = vadd.f32 %v2113, %v2232
      %v2252 = vadd.f32 %v2116, %v2232
      %v2253 = vadd.f32 %v2118, %v2232
      %v2254 = vadd.f32 %v2121, %v2232
      %v2255 = vadd.f32 %v2123, %v2232
      %v2256 = vadd.f32 %v2126, %v2232
      %v2257 = vadd.f32 %v2128, %v2232
      %v2258 = vadd.f32 %v2131, %v2232
      %v2259 = vadd.f32 %v2133, %v2232
      %v2260 = vadd.f32 %v2136, %v2232
      %v2261 = vadd.f32 %v2138, %v2232
      %v2262 = vadd.f32 %v2141, %v2232
      %v2263 = vadd.f32 %v2143, %v2232
      %v2264 = vadd.f32 %v2146, %v2232
      %v2265 = vadd.f32 %v2148, %v2232
      %v2266 = vadd.f32 %v2151, %v2232
      %v2267 = vadd.f32 %v2153, %v2232
      %v2268 = vadd.f32 %v2156, %v2232
      %v2269 = vadd.f32 %v2158, %v2232
      %v2270 = vadd.f32 %v2161, %v2232
      %v2271 = vadd.f32 %v2163, %v2232
      %v2272 = vadd.f32 %v2166, %v2232
      %v2273 = vadd.f32 %v2168, %v2232
      %v2274 = vadd.f32 %v2171, %v2232
      %v2275 = vadd.f32 %v2173, %v2232
      %v2276 = vadd.f32 %v2176, %v2232
      %v2277 = vadd.f32 %v2178, %v2232
      %v2278 = vadd.f32 %v2181, %v2232
      %v2279 = vadd.f32 %v2183, %v2232
      %v2280 = vadd.f32 %v2186, %v2232
      %v2281 = vadd.f32 %v2188, %v2232
      %v2282 = vadd.f32 %v2191, %v2232
      %v2283 = vadd.f32 %v2193, %v2232
      %v2284 = vadd.f32 %v2196, %v2232
      %v2285 = vadd.f32 %v2198, %v2232
      %v2286 = vadd.f32 %v2201, %v2232
      %v2287 = vadd.f32 %v2203, %v2232
      %v2288 = vadd.f32 %v2206, %v2232
      %v2289 = vadd.f32 %v2208, %v2232
      %v2290 = vadd.f32 %v2211, %v2232
      %v2291 = vadd.f32 %v2213, %v2232
      %v2292 = vadd.f32 %v2216, %v2232
      %v2293 = vadd.f32 %v2218, %v2232
      %v2294 = vadd.f32 %v2221, %v2232
      %v2295 = vadd.f32 %v2223, %v2232
      %v2296 = vadd.f32 %v2226, %v2232
      %v2297 = vadd.f32 %v2228, %v2232
      %vm2298 = vcmask 15360
      %2299 = vst.msk [vmem:[%s226] sm:$0xff] %vm2298, %v2234
      %2300 = vst.msk [vmem:[%s226 + $0x8] sm:$0xff] %vm2298, %v2235
      %2301 = vst.msk [vmem:[%s226 + $0x10] sm:$0xff] %vm2298, %v2236
      %2302 = vst.msk [vmem:[%s226 + $0x18] sm:$0xff] %vm2298, %v2237
      %2303 = vst.msk [vmem:[%s226 + $0x20] sm:$0xff] %vm2298, %v2238
      %2304 = vst.msk [vmem:[%s226 + $0x28] sm:$0xff] %vm2298, %v2239
      %2305 = vst.msk [vmem:[%s226 + $0x30] sm:$0xff] %vm2298, %v2240
      %2306 = vst.msk [vmem:[%s226 + $0x38] sm:$0xff] %vm2298, %v2241
      %2307 = vst.msk [vmem:[%s226 + $0x40] sm:$0xff] %vm2298, %v2242
      %2308 = vst.msk [vmem:[%s226 + $0x48] sm:$0xff] %vm2298, %v2243
      %2309 = vst.msk [vmem:[%s226 + $0x50] sm:$0xff] %vm2298, %v2244
      %2310 = vst.msk [vmem:[%s226 + $0x58] sm:$0xff] %vm2298, %v2245
      %2311 = vst.msk [vmem:[%s226 + $0x60] sm:$0xff] %vm2298, %v2246
      %2312 = vst.msk [vmem:[%s226 + $0x68] sm:$0xff] %vm2298, %v2247
      %2313 = vst.msk [vmem:[%s226 + $0x70] sm:$0xff] %vm2298, %v2248
      %2314 = vst.msk [vmem:[%s226 + $0x78] sm:$0xff] %vm2298, %v2249
      %2315 = vst.msk [vmem:[%s226 + $0x80] sm:$0xff] %vm2298, %v2250
      %2316 = vst.msk [vmem:[%s226 + $0x88] sm:$0xff] %vm2298, %v2251
      %2317 = vst.msk [vmem:[%s226 + $0x90] sm:$0xff] %vm2298, %v2252
      %2318 = vst.msk [vmem:[%s226 + $0x98] sm:$0xff] %vm2298, %v2253
      %2319 = vst.msk [vmem:[%s226 + $0xa0] sm:$0xff] %vm2298, %v2254
      %2320 = vst.msk [vmem:[%s226 + $0xa8] sm:$0xff] %vm2298, %v2255
      %2321 = vst.msk [vmem:[%s226 + $0xb0] sm:$0xff] %vm2298, %v2256
      %2322 = vst.msk [vmem:[%s226 + $0xb8] sm:$0xff] %vm2298, %v2257
      %2323 = vst.msk [vmem:[%s226 + $0xc0] sm:$0xff] %vm2298, %v2258
      %2324 = vst.msk [vmem:[%s226 + $0xc8] sm:$0xff] %vm2298, %v2259
      %2325 = vst.msk [vmem:[%s226 + $0xd0] sm:$0xff] %vm2298, %v2260
      %2326 = vst.msk [vmem:[%s226 + $0xd8] sm:$0xff] %vm2298, %v2261
      %2327 = vst.msk [vmem:[%s226 + $0xe0] sm:$0xff] %vm2298, %v2262
      %2328 = vst.msk [vmem:[%s226 + $0xe8] sm:$0xff] %vm2298, %v2263
      %2329 = vst.msk [vmem:[%s226 + $0xf0] sm:$0xff] %vm2298, %v2264
      %2330 = vst.msk [vmem:[%s226 + $0xf8] sm:$0xff] %vm2298, %v2265
      %2331 = vst.msk [vmem:[%s226 + $0x100] sm:$0xff] %vm2298, %v2266
      %2332 = vst.msk [vmem:[%s226 + $0x108] sm:$0xff] %vm2298, %v2267
      %2333 = vst.msk [vmem:[%s226 + $0x110] sm:$0xff] %vm2298, %v2268
      %2334 = vst.msk [vmem:[%s226 + $0x118] sm:$0xff] %vm2298, %v2269
      %2335 = vst.msk [vmem:[%s226 + $0x120] sm:$0xff] %vm2298, %v2270
      %2336 = vst.msk [vmem:[%s226 + $0x128] sm:$0xff] %vm2298, %v2271
      %2337 = vst.msk [vmem:[%s226 + $0x130] sm:$0xff] %vm2298, %v2272
      %2338 = vst.msk [vmem:[%s226 + $0x138] sm:$0xff] %vm2298, %v2273
      %2339 = vst.msk [vmem:[%s226 + $0x140] sm:$0xff] %vm2298, %v2274
      %2340 = vst.msk [vmem:[%s226 + $0x148] sm:$0xff] %vm2298, %v2275
      %2341 = vst.msk [vmem:[%s226 + $0x150] sm:$0xff] %vm2298, %v2276
      %2342 = vst.msk [vmem:[%s226 + $0x158] sm:$0xff] %vm2298, %v2277
      %2343 = vst.msk [vmem:[%s226 + $0x160] sm:$0xff] %vm2298, %v2278
      %2344 = vst.msk [vmem:[%s226 + $0x168] sm:$0xff] %vm2298, %v2279
      %2345 = vst.msk [vmem:[%s226 + $0x170] sm:$0xff] %vm2298, %v2280
      %2346 = vst.msk [vmem:[%s226 + $0x178] sm:$0xff] %vm2298, %v2281
      %2347 = vst.msk [vmem:[%s226 + $0x180] sm:$0xff] %vm2298, %v2282
      %2348 = vst.msk [vmem:[%s226 + $0x188] sm:$0xff] %vm2298, %v2283
      %2349 = vst.msk [vmem:[%s226 + $0x190] sm:$0xff] %vm2298, %v2284
      %2350 = vst.msk [vmem:[%s226 + $0x198] sm:$0xff] %vm2298, %v2285
      %2351 = vst.msk [vmem:[%s226 + $0x1a0] sm:$0xff] %vm2298, %v2286
      %2352 = vst.msk [vmem:[%s226 + $0x1a8] sm:$0xff] %vm2298, %v2287
      %2353 = vst.msk [vmem:[%s226 + $0x1b0] sm:$0xff] %vm2298, %v2288
      %2354 = vst.msk [vmem:[%s226 + $0x1b8] sm:$0xff] %vm2298, %v2289
      %2355 = vst.msk [vmem:[%s226 + $0x1c0] sm:$0xff] %vm2298, %v2290
      %2356 = vst.msk [vmem:[%s226 + $0x1c8] sm:$0xff] %vm2298, %v2291
      %2357 = vst.msk [vmem:[%s226 + $0x1d0] sm:$0xff] %vm2298, %v2292
      %2358 = vst.msk [vmem:[%s226 + $0x1d8] sm:$0xff] %vm2298, %v2293
      %2359 = vst.msk [vmem:[%s226 + $0x1e0] sm:$0xff] %vm2298, %v2294
      %2360 = vst.msk [vmem:[%s226 + $0x1e8] sm:$0xff] %vm2298, %v2295
      %2361 = vst.msk [vmem:[%s226 + $0x1f0] sm:$0xff] %vm2298, %v2296
      %2362 = vst.msk [vmem:[%s226 + $0x1f8] sm:$0xff] %vm2298, %v2297
      %s2363 = smul.u32 64, %s16
      %p2364 = scmp.lt.s32.totalorder %s2363, 127
      %s2365 = scalar_select %p2364, %s2363, 127
      %s2366 = smul.addr %s2365, 8
      %s2367 = scalar_lea.vmem %s5, %s2366
      // Predicated region
      $region41: #{cartpole_reinforce_forward.1} parent=39 // pred_check
        %p2368 = pneg %p144
      $region42: #{cartpole_reinforce_forward.1} parent=39 // pred_check_branch
        %2370 = sbr.rel (%p2368) target = $region44
      $region43: #{cartpole_reinforce_forward.1} parent=39 // pred_region
        %s2371 = smul.u32 64, %s16
      $region44: #{cartpole_reinforce_forward.1} parent=39 // pred_fallthru
        _
    $region40: #{cartpole_reinforce_forward.1} parent=5 // pred_fallthru
      _
    %p2372 = scmp.le.s32.totalorder 2, %s11
    // Predicated region
    $region45: #{cartpole_reinforce_forward.1} parent=5 // pred_check
      %p2373 = pneg %p2372
    $region46: #{cartpole_reinforce_forward.1} parent=5 // pred_check_branch
      %2375 = sbr.rel (%p2373) target = $region48
    $region47: #{cartpole_reinforce_forward.1} parent=5 // pred_region
      %s2376 = ssub.s32 %s11, 2
      // Predicated region
      $region49: #{cartpole_reinforce_forward.1} parent=47 // pred_check
        %p2377 = pneg %p150
      $region50: #{cartpole_reinforce_forward.1} parent=47 // pred_check_branch
        %2379 = sbr.rel (%p2377) target = $region52
      $region51: #{cartpole_reinforce_forward.1} parent=47 // pred_region
        %s2380 = smul.u32 64, %s17
        %p2381 = scmp.lt.s32.totalorder %s2380, 127
        %s2382 = scalar_select %p2381, %s2380, 127
        %s2383 = smul.addr %s2382, 8
        %s2384 = scalar_lea.vmem %s5, %s2383
      $region52: #{cartpole_reinforce_forward.1} parent=47 // pred_fallthru
        _
    $region48: #{cartpole_reinforce_forward.1} parent=5 // pred_fallthru
      _
  $region6: #{cartpole_reinforce_forward.1} parent=0 // loop_footer
    %s15 = sadd.s32 1, %s11
  $region7: #{cartpole_reinforce_forward.1} parent=0 // loop_footer_branch
    %10 = sbr.rel target = $region3
  $region8: #{cartpole_reinforce_forward.1} parent=0 // loop_exit
    _

</llo_original>
